<compile_context>
chip_gen: v5e
topology: v5e:2x2
jax: 0.10.0
libtpu: 0.0.40
codegen_flags: <defaults>
</compile_context>

<pallas_src>
import jax
import jax.numpy as jnp
from jax import lax
from jax.experimental import pallas as pl
from jax.experimental.pallas import tpu as pltpu


def _round_up(x, m):
    return (x + m - 1) // m * m


# --------------------------------------------------------------------------
# Generic tiled matmul + bias kernel (bf16 MXU inputs, f32 accumulate).
# Used for (a) the hoisted x @ W_ih_fused + b and (b) the output projection.
# --------------------------------------------------------------------------
def _matmul_bias_kernel(x_ref, w_ref, b_ref, o_ref):
    x = x_ref[...].astype(jnp.bfloat16)
    o_ref[...] = (jnp.dot(x, w_ref[...], preferred_element_type=jnp.float32)
                  + b_ref[...]).astype(o_ref.dtype)


def matmul_bias_pallas(x2d, w_bf16, b2d, tm=512):
    """x2d: (M, K) f32, w_bf16: (K, N) bf16, b2d: (1, N) f32 -> (M, N) f32."""
    M, K = x2d.shape
    N = w_bf16.shape[-1]
    tm = min(tm, _round_up(M, 8))          # tile over rows only
    Mp = _round_up(M, tm)
    if Mp != M:
        x2d = jnp.pad(x2d, ((0, Mp - M), (0, 0)))
    out = pl.pallas_call(
        _matmul_bias_kernel,
        out_shape=jax.ShapeDtypeStruct((Mp, N), jnp.float32),
        grid_spec=pltpu.PrefetchScalarGridSpec(
            num_scalar_prefetch=0,
            grid=(Mp // tm,),
            in_specs=[
                pl.BlockSpec((tm, K), lambda i: (i, 0)),
                pl.BlockSpec((K, N), lambda i: (0, 0)),
                pl.BlockSpec((1, N), lambda i: (0, 0)),
            ],
            out_specs=pl.BlockSpec((tm, N), lambda i: (i, 0)),
        ),
        compiler_params=pltpu.CompilerParams(
            dimension_semantics=("parallel",)),
    )(x2d, w_bf16, b2d)
    return out[:M]


# --------------------------------------------------------------------------
# Recurrent LSTM kernel: only h @ W_hh_fused remains inside the time loop.
# Grid iterates over time CHUNKS; (h, c) state lives in VMEM scratch and is
# carried across grid steps (time axis must stay "arbitrary").
# --------------------------------------------------------------------------
def _lstm_recurrence_kernel(gx_ref, whh_ref, out_ref, h_scr, c_scr):
    @pl.when(pl.program_id(0) == 0)
    def _():
        h_scr[...] = jnp.zeros_like(h_scr)
        c_scr[...] = jnp.zeros_like(c_scr)

    H = h_scr.shape[-1]
    tc = gx_ref.shape[0]                     # timesteps in this chunk (static)

    def step(t, carry):
        h, c = carry
        # Single fused (B, H) x (H, 4H) matmul; x-contribution + bias already
        # folded into gx_ref.
        gates = gx_ref[t] + jnp.dot(h.astype(whh_ref.dtype), whh_ref[...],
                                    preferred_element_type=jnp.float32)
        i_g = jax.nn.sigmoid(gates[:, 0 * H:1 * H])
        f_g = jax.nn.sigmoid(gates[:, 1 * H:2 * H])
        g_g = jnp.tanh(gates[:, 2 * H:3 * H])
        o_g = jax.nn.sigmoid(gates[:, 3 * H:4 * H])
        c_new = f_g * c + i_g * g_g
        h_new = o_g * jnp.tanh(c_new)
        out_ref[t] = h_new
        return h_new, c_new

    h_fin, c_fin = lax.fori_loop(0, tc, step, (h_scr[...], c_scr[...]),
                                 unroll=True)
    h_scr[...] = h_fin
    c_scr[...] = c_fin


def lstm_recurrence_pallas(gx_tm, whh_bf16, time_chunk=16):
    """gx_tm: (T, Bp, 4H) f32 precomputed x-gates (+bias), time-major.
       whh_bf16: (H, 4H) bf16.  Returns h sequence (T, Bp, H) f32."""
    T, Bp, G = gx_tm.shape
    H = G // 4
    tc = min(time_chunk, T)
    Tp = _round_up(T, tc)
    if Tp != T:
        # Padded trailing timesteps produce garbage h after the valid range;
        # they never feed back into valid outputs and are sliced off below.
        gx_tm = jnp.pad(gx_tm, ((0, Tp - T), (0, 0), (0, 0)))
    out = pl.pallas_call(
        _lstm_recurrence_kernel,
        out_shape=jax.ShapeDtypeStruct((Tp, Bp, H), jnp.float32),
        grid_spec=pltpu.PrefetchScalarGridSpec(
            num_scalar_prefetch=0,
            grid=(Tp // tc,),
            in_specs=[
                pl.BlockSpec((tc, Bp, G), lambda i: (i, 0, 0)),
                pl.BlockSpec((H, G), lambda i: (0, 0)),
            ],
            out_specs=pl.BlockSpec((tc, Bp, H), lambda i: (i, 0, 0)),
            scratch_shapes=[
                pltpu.VMEM((Bp, H), jnp.float32),   # h state
                pltpu.VMEM((Bp, H), jnp.float32),   # c state
            ],
        ),
        compiler_params=pltpu.CompilerParams(
            dimension_semantics=("arbitrary",)),    # serial recurrence
    )(gx_tm, whh_bf16)
    return out[:T]


# --------------------------------------------------------------------------
# Parameter construction (PyTorch-style uniform(-k, k), PyTorch layout)
# --------------------------------------------------------------------------
def init_apc_lstm_params(key, input_size, hidden_size, num_layers):
    k = 1.0 / jnp.sqrt(jnp.float32(hidden_size))
    params = {"layers": []}
    for layer in range(num_layers):
        din = input_size if layer == 0 else hidden_size
        key, k1, k2, k3, k4 = jax.random.split(key, 5)
        w_ih = jax.random.uniform(k1, (4 * hidden_size, din), jnp.float32, -k, k)
        w_hh = jax.random.uniform(k2, (4 * hidden_size, hidden_size), jnp.float32, -k, k)
        b_ih = jax.random.uniform(k3, (4 * hidden_size,), jnp.float32, -k, k)
        b_hh = jax.random.uniform(k4, (4 * hidden_size,), jnp.float32, -k, k)
        params["layers"].append((w_ih, w_hh, b_ih, b_hh))
    key, k5, k6 = jax.random.split(key, 3)
    params["proj_w"] = jax.random.uniform(
        k5, (input_size, hidden_size), jnp.float32, -k, k)
    params["proj_b"] = jax.random.uniform(k6, (input_size,), jnp.float32, -k, k)
    return params


def prepare_apc_lstm_params(params):
    """One-time prep: fuse/transposed gate weights (Din,4H)/(H,4H)/(1,4H),
    cast matmul weights to bf16, keep biases in f32."""
    prep = {"layers": []}
    for (w_ih, w_hh, b_ih, b_hh) in params["layers"]:
        wih_f = jnp.asarray(w_ih.T, jnp.bfloat16)          # (Din, 4H), i|f|g|o
        whh_f = jnp.asarray(w_hh.T, jnp.bfloat16)          # (H,   4H)
        b_f = (b_ih + b_hh).reshape(1, -1).astype(jnp.float32)  # (1, 4H)
        prep["layers"].append((wih_f, whh_f, b_f))
    prep["proj_w_t"] = jnp.asarray(params["proj_w"].T, jnp.bfloat16)  # (H, Din)
    prep["proj_b"] = params["proj_b"].reshape(1, -1).astype(jnp.float32)
    return prep


# --------------------------------------------------------------------------
# Forward pass (== ApcLstm.forward): returns (hidden, proj(hidden))
# --------------------------------------------------------------------------
@jax.jit
def apc_lstm_forward(feat, prep):
    """feat: (B, T, input_size) batch-first, like the PyTorch module."""
    B, T, Din = feat.shape
    H = prep["layers"][0][1].shape[0]
    Bp = _round_up(B, 8)                       # sublane-pad the batch
    x = feat.astype(jnp.float32)
    if Bp != B:
        x = jnp.pad(x, ((0, Bp - B), (0, 0), (0, 0)))
    x_tm = jnp.swapaxes(x, 0, 1)               # time-major (T, Bp, Din)

    for (wih_f, whh_f, b_f) in prep["layers"]:
        # Hoisted, throughput-bound x-gate matmul over all timesteps at once.
        gx = matmul_bias_pallas(x_tm.reshape(T * Bp, x_tm.shape[-1]), wih_f, b_f)
        gx = gx.reshape(T, Bp, 4 * H)
        # Serial recurrence: only h @ W_hh inside the time loop.
        x_tm = lstm_recurrence_pallas(gx, whh_f)          # (T, Bp, H)

    hidden_p = jnp.swapaxes(x_tm, 0, 1)        # (Bp, T, H) batch-first
    pred_p = matmul_bias_pallas(hidden_p.reshape(Bp * T, H),
                                prep["proj_w_t"], prep["proj_b"])
    pred_p = pred_p.reshape(Bp, T, Din)
    return hidden_p[:B], pred_p[:B]


# --------------------------------------------------------------------------
# Pure-JAX f32 reference (for correctness check)
# --------------------------------------------------------------------------
def apc_lstm_reference(feat, params, hidden_size):
    B, T, Din = feat.shape
    H = hidden_size
    x = feat.astype(jnp.float32)
    for (w_ih, w_hh, b_ih, b_hh) in params["layers"]:
        def step(carry, x_t):
            h, c = carry
            gates = x_t @ w_ih.T + h @ w_hh.T + b_ih + b_hh
            i = jax.nn.sigmoid(gates[:, 0 * H:1 * H])
            f = jax.nn.sigmoid(gates[:, 1 * H:2 * H])
            g = jnp.tanh(gates[:, 2 * H:3 * H])
            o = jax.nn.sigmoid(gates[:, 3 * H:4 * H])
            c_new = f * c + i * g
            h_new = o * jnp.tanh(c_new)
            return (h_new, c_new), h_new
        init = (jnp.zeros((B, H), jnp.float32), jnp.zeros((B, H), jnp.float32))
        _, hs = lax.scan(step, init, jnp.swapaxes(x, 0, 1))
        x = jnp.swapaxes(hs, 0, 1)
    hidden = x
    pred = hidden @ params["proj_w"].T + params["proj_b"]
    return hidden, pred


if __name__ == "__main__":
    # Small shapes consistent with the module: feat (B, T, input_size)
    B, T = 2, 8
    input_size, hidden_size, num_layers = 16, 32, 2

    key = jax.random.PRNGKey(0)
    key, pkey, xkey = jax.random.split(key, 3)
    params = init_apc_lstm_params(pkey, input_size, hidden_size, num_layers)
    prep = prepare_apc_lstm_params(params)      # one-time weight fusion/cast
    feat = jax.random.normal(xkey, (B, T, input_size), jnp.float32)

    hidden, pred = apc_lstm_forward(feat, prep)
    hidden = jax.block_until_ready(hidden)
    pred = jax.block_until_ready(pred)

    assert hidden.shape == (B, T, hidden_size)
    assert pred.shape == (B, T, input_size)

    # Numerics vs pure-JAX f32 reference (tolerance loosened for bf16 matmuls).
    ref_hidden, ref_pred = apc_lstm_reference(feat, params, hidden_size)
    assert jnp.allclose(hidden, ref_hidden, rtol=5e-2, atol=5e-2), (
        float(jnp.max(jnp.abs(hidden - ref_hidden))))
    assert jnp.allclose(pred, ref_pred, rtol=5e-2, atol=5e-2), (
        float(jnp.max(jnp.abs(pred - ref_pred))))

    print("KERNEL_OK")
</pallas_src>

<mosaic_0001>
module attributes {stable_mosaic.version = 11 : i64} {
  func.func @_matmul_bias_kernel(%arg0: i32, %arg1: memref<64x16xf32, #tpu.memory_space<vmem>>, %arg2: memref<16x128xbf16, #tpu.memory_space<vmem>>, %arg3: memref<1x128xf32, #tpu.memory_space<vmem>>, %arg4: memref<64x128xf32, #tpu.memory_space<vmem>>) attributes {dimension_semantics = [#tpu.dimension_semantics<parallel>], iteration_bounds = array<i64: 1>, scalar_prefetch = 0 : i64, scratch_operands = 0 : i64, tpu.core_type = #tpu.core_type<tc>, window_params = [{transform_indices = @transform_0, window_bounds = array<i64: 64, 16>}, {pipeline_mode = #tpu.pipeline_mode<synchronous>, transform_indices = @transform_1, window_bounds = array<i64: 16, 128>}, {pipeline_mode = #tpu.pipeline_mode<synchronous>, transform_indices = @transform_2, window_bounds = array<i64: 1, 128>}, {transform_indices = @transform_3, window_bounds = array<i64: 64, 128>}]} {
    %c0 = arith.constant 0 : index
    %c0_0 = arith.constant 0 : index
    %0 = vector.load %arg1[%c0, %c0_0] : memref<64x16xf32, #tpu.memory_space<vmem>>, vector<64x16xf32>
    %1 = arith.truncf %0 : vector<64x16xf32> to vector<64x16xbf16>
    %c0_1 = arith.constant 0 : index
    %c0_2 = arith.constant 0 : index
    %2 = vector.load %arg2[%c0_1, %c0_2] : memref<16x128xbf16, #tpu.memory_space<vmem>>, vector<16x128xbf16>
    %cst = arith.constant dense<0.000000e+00> : vector<64x128xf32>
    %3 = tpu.matmul %1, %2, %cst {dimension_numbers = #tpu.dot_dimension_numbers<[1], [0], [0], [1], [0, 0, 1, 1], [], []>} : vector<64x16xbf16>, vector<16x128xbf16>, vector<64x128xf32> -> vector<64x128xf32>
    %c0_3 = arith.constant 0 : index
    %c0_4 = arith.constant 0 : index
    %4 = vector.load %arg3[%c0_3, %c0_4] : memref<1x128xf32, #tpu.memory_space<vmem>>, vector<1x128xf32>
    %5 = vector.broadcast %4 : vector<1x128xf32> to vector<64x128xf32>
    %6 = arith.addf %3, %5 : vector<64x128xf32>
    %c0_5 = arith.constant 0 : index
    %c0_6 = arith.constant 0 : index
    %7 = vector.load %arg4[%c0_5, %c0_6] : memref<64x128xf32, #tpu.memory_space<vmem>>, vector<64x128xf32>
    tpu.vector_store %arg4[%c0_5, %c0_6], %6 {strides = array<i32>} : memref<64x128xf32, #tpu.memory_space<vmem>>, vector<64x128xf32>,
    return
  }
  func.func @transform_0(%arg0: i32) -> (i32, i32) {
    %c0_i32 = arith.constant 0 : i32
    %c0_i32_0 = arith.constant 0 : i32
    return %arg0, %c0_i32 : i32, i32
  }
  func.func @transform_1(%arg0: i32) -> (i32, i32) {
    %c0_i32 = arith.constant 0 : i32
    %c0_i32_0 = arith.constant 0 : i32
    %c0_i32_1 = arith.constant 0 : i32
    return %c0_i32, %c0_i32_0 : i32, i32
  }
  func.func @transform_2(%arg0: i32) -> (i32, i32) {
    %c0_i32 = arith.constant 0 : i32
    %c0_i32_0 = arith.constant 0 : i32
    %c0_i32_1 = arith.constant 0 : i32
    return %c0_i32, %c0_i32_0 : i32, i32
  }
  func.func @transform_3(%arg0: i32) -> (i32, i32) {
    %c0_i32 = arith.constant 0 : i32
    %c0_i32_0 = arith.constant 0 : i32
    return %arg0, %c0_i32 : i32, i32
  }
}

module attributes {stable_mosaic.version = 11 : i64} {
  func.func @_matmul_bias_kernel(%arg0: i32, %arg1: memref<64x32xf32, #tpu.memory_space<vmem>>, %arg2: memref<32x128xbf16, #tpu.memory_space<vmem>>, %arg3: memref<1x128xf32, #tpu.memory_space<vmem>>, %arg4: memref<64x128xf32, #tpu.memory_space<vmem>>) attributes {dimension_semantics = [#tpu.dimension_semantics<parallel>], iteration_bounds = array<i64: 1>, scalar_prefetch = 0 : i64, scratch_operands = 0 : i64, tpu.core_type = #tpu.core_type<tc>, window_params = [{transform_indices = @transform_0, window_bounds = array<i64: 64, 32>}, {pipeline_mode = #tpu.pipeline_mode<synchronous>, transform_indices = @transform_1, window_bounds = array<i64: 32, 128>}, {pipeline_mode = #tpu.pipeline_mode<synchronous>, transform_indices = @transform_2, window_bounds = array<i64: 1, 128>}, {transform_indices = @transform_3, window_bounds = array<i64: 64, 128>}]} {
    %c0 = arith.constant 0 : index
    %c0_0 = arith.constant 0 : index
    %0 = vector.load %arg1[%c0, %c0_0] : memref<64x32xf32, #tpu.memory_space<vmem>>, vector<64x32xf32>
    %1 = arith.truncf %0 : vector<64x32xf32> to vector<64x32xbf16>
    %c0_1 = arith.constant 0 : index
    %c0_2 = arith.constant 0 : index
    %2 = vector.load %arg2[%c0_1, %c0_2] : memref<32x128xbf16, #tpu.memory_space<vmem>>, vector<32x128xbf16>
    %cst = arith.constant dense<0.000000e+00> : vector<64x128xf32>
    %3 = tpu.matmul %1, %2, %cst {dimension_numbers = #tpu.dot_dimension_numbers<[1], [0], [0], [1], [0, 0, 1, 1], [], []>} : vector<64x32xbf16>, vector<32x128xbf16>, vector<64x128xf32> -> vector<64x128xf32>
    %c0_3 = arith.constant 0 : index
    %c0_4 = arith.constant 0 : index
    %4 = vector.load %arg3[%c0_3, %c0_4] : memref<1x128xf32, #tpu.memory_space<vmem>>, vector<1x128xf32>
    %5 = vector.broadcast %4 : vector<1x128xf32> to vector<64x128xf32>
    %6 = arith.addf %3, %5 : vector<64x128xf32>
    %c0_5 = arith.constant 0 : index
    %c0_6 = arith.constant 0 : index
    %7 = vector.load %arg4[%c0_5, %c0_6] : memref<64x128xf32, #tpu.memory_space<vmem>>, vector<64x128xf32>
    tpu.vector_store %arg4[%c0_5, %c0_6], %6 {strides = array<i32>} : memref<64x128xf32, #tpu.memory_space<vmem>>, vector<64x128xf32>,
    return
  }
  func.func @transform_0(%arg0: i32) -> (i32, i32) {
    %c0_i32 = arith.constant 0 : i32
    %c0_i32_0 = arith.constant 0 : i32
    return %arg0, %c0_i32 : i32, i32
  }
  func.func @transform_1(%arg0: i32) -> (i32, i32) {
    %c0_i32 = arith.constant 0 : i32
    %c0_i32_0 = arith.constant 0 : i32
    %c0_i32_1 = arith.constant 0 : i32
    return %c0_i32, %c0_i32_0 : i32, i32
  }
  func.func @transform_2(%arg0: i32) -> (i32, i32) {
    %c0_i32 = arith.constant 0 : i32
    %c0_i32_0 = arith.constant 0 : i32
    %c0_i32_1 = arith.constant 0 : i32
    return %c0_i32, %c0_i32_0 : i32, i32
  }
  func.func @transform_3(%arg0: i32) -> (i32, i32) {
    %c0_i32 = arith.constant 0 : i32
    %c0_i32_0 = arith.constant 0 : i32
    return %arg0, %c0_i32 : i32, i32
  }
}

module attributes {stable_mosaic.version = 11 : i64} {
  func.func @_lstm_recurrence_kernel(%arg0: i32, %arg1: memref<8x8x128xf32, #tpu.memory_space<vmem>>, %arg2: memref<32x128xbf16, #tpu.memory_space<vmem>>, %arg3: memref<8x8x32xf32, #tpu.memory_space<vmem>>, %arg4: memref<8x32xf32, #tpu.memory_space<vmem>>, %arg5: memref<8x32xf32, #tpu.memory_space<vmem>>) attributes {dimension_semantics = [#tpu.dimension_semantics<arbitrary>], iteration_bounds = array<i64: 1>, scalar_prefetch = 0 : i64, scratch_operands = 2 : i64, tpu.core_type = #tpu.core_type<tc>, window_params = [{transform_indices = @transform_0, window_bounds = array<i64: 8, 8, 128>}, {pipeline_mode = #tpu.pipeline_mode<synchronous>, transform_indices = @transform_1, window_bounds = array<i64: 32, 128>}, {transform_indices = @transform_2, window_bounds = array<i64: 8, 8, 32>}]} {
    %c0_i32 = arith.constant 0 : i32
    %0 = arith.cmpi eq, %arg0, %c0_i32 : i32
    %1 = arith.extui %0 : i1 to i32
    %c0_i32_0 = arith.constant 0 : i32
    %2 = arith.cmpi ne, %1, %c0_i32_0 : i32
    scf.if %2 {
      %cst_88 = arith.constant 0.000000e+00 : f32
      %295 = vector.broadcast %cst_88 : f32 to vector<8x32xf32>
      %c0_89 = arith.constant 0 : index
      %c0_90 = arith.constant 0 : index
      %296 = vector.load %arg4[%c0_89, %c0_90] : memref<8x32xf32, #tpu.memory_space<vmem>>, vector<8x32xf32>
      tpu.vector_store %arg4[%c0_89, %c0_90], %295 {strides = array<i32>} : memref<8x32xf32, #tpu.memory_space<vmem>>, vector<8x32xf32>,
      %cst_91 = arith.constant 0.000000e+00 : f32
      %297 = vector.broadcast %cst_91 : f32 to vector<8x32xf32>
      %c0_92 = arith.constant 0 : index
      %c0_93 = arith.constant 0 : index
      %298 = vector.load %arg5[%c0_92, %c0_93] : memref<8x32xf32, #tpu.memory_space<vmem>>, vector<8x32xf32>
      tpu.vector_store %arg5[%c0_92, %c0_93], %297 {strides = array<i32>} : memref<8x32xf32, #tpu.memory_space<vmem>>, vector<8x32xf32>,
    } else {
    }
    %c0 = arith.constant 0 : index
    %c0_1 = arith.constant 0 : index
    %3 = vector.load %arg4[%c0, %c0_1] : memref<8x32xf32, #tpu.memory_space<vmem>>, vector<8x32xf32>
    %c0_2 = arith.constant 0 : index
    %c0_3 = arith.constant 0 : index
    %4 = vector.load %arg5[%c0_2, %c0_3] : memref<8x32xf32, #tpu.memory_space<vmem>>, vector<8x32xf32>
    %c0_i32_4 = arith.constant 0 : i32
    %5 = arith.index_cast %c0_i32_4 : i32 to index
    %c0_5 = arith.constant 0 : index
    %c0_6 = arith.constant 0 : index
    %6 = vector.load %arg1[%5, %c0_5, %c0_6] : memref<8x8x128xf32, #tpu.memory_space<vmem>>, vector<1x8x128xf32>
    %7 = vector.shape_cast %6 : vector<1x8x128xf32> to vector<8x128xf32>
    %8 = arith.truncf %3 : vector<8x32xf32> to vector<8x32xbf16>
    %c0_7 = arith.constant 0 : index
    %c0_8 = arith.constant 0 : index
    %9 = vector.load %arg2[%c0_7, %c0_8] : memref<32x128xbf16, #tpu.memory_space<vmem>>, vector<32x128xbf16>
    %cst = arith.constant dense<0.000000e+00> : vector<8x128xf32>
    %10 = tpu.matmul %8, %9, %cst {dimension_numbers = #tpu.dot_dimension_numbers<[1], [0], [0], [1], [0, 0, 1, 1], [], []>} : vector<8x32xbf16>, vector<32x128xbf16>, vector<8x128xf32> -> vector<8x128xf32>
    %11 = arith.addf %7, %10 : vector<8x128xf32>
    %12 = vector.extract_strided_slice %11 {offsets = [0, 0], sizes = [8, 32], strides = [1, 1]} : vector<8x128xf32> to vector<8x32xf32>
    %13 = arith.negf %12 : vector<8x32xf32>
    %14 = math.exp %13 : vector<8x32xf32>
    %cst_9 = arith.constant 1.000000e+00 : f32
    %15 = vector.broadcast %cst_9 : f32 to vector<8x32xf32>
    %16 = arith.addf %15, %14 : vector<8x32xf32>
    %17 = arith.divf %15, %16 : vector<8x32xf32>
    %18 = vector.extract_strided_slice %11 {offsets = [0, 32], sizes = [8, 32], strides = [1, 1]} : vector<8x128xf32> to vector<8x32xf32>
    %19 = arith.negf %18 : vector<8x32xf32>
    %20 = math.exp %19 : vector<8x32xf32>
    %cst_10 = arith.constant 1.000000e+00 : f32
    %21 = vector.broadcast %cst_10 : f32 to vector<8x32xf32>
    %22 = arith.addf %21, %20 : vector<8x32xf32>
    %23 = arith.divf %21, %22 : vector<8x32xf32>
    %24 = vector.extract_strided_slice %11 {offsets = [0, 64], sizes = [8, 32], strides = [1, 1]} : vector<8x128xf32> to vector<8x32xf32>
    %25 = math.tanh %24 : vector<8x32xf32>
    %26 = vector.extract_strided_slice %11 {offsets = [0, 96], sizes = [8, 32], strides = [1, 1]} : vector<8x128xf32> to vector<8x32xf32>
    %27 = arith.negf %26 : vector<8x32xf32>
    %28 = math.exp %27 : vector<8x32xf32>
    %cst_11 = arith.constant 1.000000e+00 : f32
    %29 = vector.broadcast %cst_11 : f32 to vector<8x32xf32>
    %30 = arith.addf %29, %28 : vector<8x32xf32>
    %31 = arith.divf %29, %30 : vector<8x32xf32>
    %32 = arith.mulf %23, %4 : vector<8x32xf32>
    %33 = arith.mulf %17, %25 : vector<8x32xf32>
    %34 = arith.addf %32, %33 : vector<8x32xf32>
    %35 = math.tanh %34 : vector<8x32xf32>
    %36 = arith.mulf %31, %35 : vector<8x32xf32>
    %37 = arith.index_cast %c0_i32_4 : i32 to index
    %c0_12 = arith.constant 0 : index
    %c0_13 = arith.constant 0 : index
    %38 = vector.load %arg3[%37, %c0_12, %c0_13] : memref<8x8x32xf32, #tpu.memory_space<vmem>>, vector<1x8x32xf32>
    %39 = vector.shape_cast %38 : vector<1x8x32xf32> to vector<8x32xf32>
    %40 = vector.shape_cast %36 : vector<8x32xf32> to vector<1x8x32xf32>
    tpu.vector_store %arg3[%37, %c0_12, %c0_13], %40 {strides = array<i32>} : memref<8x8x32xf32, #tpu.memory_space<vmem>>, vector<1x8x32xf32>,
    %c1_i32 = arith.constant 1 : i32
    %41 = arith.index_cast %c1_i32 : i32 to index
    %c0_14 = arith.constant 0 : index
    %c0_15 = arith.constant 0 : index
    %42 = vector.load %arg1[%41, %c0_14, %c0_15] : memref<8x8x128xf32, #tpu.memory_space<vmem>>, vector<1x8x128xf32>
    %43 = vector.shape_cast %42 : vector<1x8x128xf32> to vector<8x128xf32>
    %44 = arith.truncf %36 : vector<8x32xf32> to vector<8x32xbf16>
    %c0_16 = arith.constant 0 : index
    %c0_17 = arith.constant 0 : index
    %45 = vector.load %arg2[%c0_16, %c0_17] : memref<32x128xbf16, #tpu.memory_space<vmem>>, vector<32x128xbf16>
    %cst_18 = arith.constant dense<0.000000e+00> : vector<8x128xf32>
    %46 = tpu.matmul %44, %45, %cst_18 {dimension_numbers = #tpu.dot_dimension_numbers<[1], [0], [0], [1], [0, 0, 1, 1], [], []>} : vector<8x32xbf16>, vector<32x128xbf16>, vector<8x128xf32> -> vector<8x128xf32>
    %47 = arith.addf %43, %46 : vector<8x128xf32>
    %48 = vector.extract_strided_slice %47 {offsets = [0, 0], sizes = [8, 32], strides = [1, 1]} : vector<8x128xf32> to vector<8x32xf32>
    %49 = arith.negf %48 : vector<8x32xf32>
    %50 = math.exp %49 : vector<8x32xf32>
    %cst_19 = arith.constant 1.000000e+00 : f32
    %51 = vector.broadcast %cst_19 : f32 to vector<8x32xf32>
    %52 = arith.addf %51, %50 : vector<8x32xf32>
    %53 = arith.divf %51, %52 : vector<8x32xf32>
    %54 = vector.extract_strided_slice %47 {offsets = [0, 32], sizes = [8, 32], strides = [1, 1]} : vector<8x128xf32> to vector<8x32xf32>
    %55 = arith.negf %54 : vector<8x32xf32>
    %56 = math.exp %55 : vector<8x32xf32>
    %cst_20 = arith.constant 1.000000e+00 : f32
    %57 = vector.broadcast %cst_20 : f32 to vector<8x32xf32>
    %58 = arith.addf %57, %56 : vector<8x32xf32>
    %59 = arith.divf %57, %58 : vector<8x32xf32>
    %60 = vector.extract_strided_slice %47 {offsets = [0, 64], sizes = [8, 32], strides = [1, 1]} : vector<8x128xf32> to vector<8x32xf32>
    %61 = math.tanh %60 : vector<8x32xf32>
    %62 = vector.extract_strided_slice %47 {offsets = [0, 96], sizes = [8, 32], strides = [1, 1]} : vector<8x128xf32> to vector<8x32xf32>
    %63 = arith.negf %62 : vector<8x32xf32>
    %64 = math.exp %63 : vector<8x32xf32>
    %cst_21 = arith.constant 1.000000e+00 : f32
    %65 = vector.broadcast %cst_21 : f32 to vector<8x32xf32>
    %66 = arith.addf %65, %64 : vector<8x32xf32>
    %67 = arith.divf %65, %66 : vector<8x32xf32>
    %68 = arith.mulf %59, %34 : vector<8x32xf32>
    %69 = arith.mulf %53, %61 : vector<8x32xf32>
    %70 = arith.addf %68, %69 : vector<8x32xf32>
    %71 = math.tanh %70 : vector<8x32xf32>
    %72 = arith.mulf %67, %71 : vector<8x32xf32>
    %73 = arith.index_cast %c1_i32 : i32 to index
    %c0_22 = arith.constant 0 : index
    %c0_23 = arith.constant 0 : index
    %74 = vector.load %arg3[%73, %c0_22, %c0_23] : memref<8x8x32xf32, #tpu.memory_space<vmem>>, vector<1x8x32xf32>
    %75 = vector.shape_cast %74 : vector<1x8x32xf32> to vector<8x32xf32>
    %76 = vector.shape_cast %72 : vector<8x32xf32> to vector<1x8x32xf32>
    tpu.vector_store %arg3[%73, %c0_22, %c0_23], %76 {strides = array<i32>} : memref<8x8x32xf32, #tpu.memory_space<vmem>>, vector<1x8x32xf32>,
    %c2_i32 = arith.constant 2 : i32
    %77 = arith.index_cast %c2_i32 : i32 to index
    %c0_24 = arith.constant 0 : index
    %c0_25 = arith.constant 0 : index
    %78 = vector.load %arg1[%77, %c0_24, %c0_25] : memref<8x8x128xf32, #tpu.memory_space<vmem>>, vector<1x8x128xf32>
    %79 = vector.shape_cast %78 : vector<1x8x128xf32> to vector<8x128xf32>
    %80 = arith.truncf %72 : vector<8x32xf32> to vector<8x32xbf16>
    %c0_26 = arith.constant 0 : index
    %c0_27 = arith.constant 0 : index
    %81 = vector.load %arg2[%c0_26, %c0_27] : memref<32x128xbf16, #tpu.memory_space<vmem>>, vector<32x128xbf16>
    %cst_28 = arith.constant dense<0.000000e+00> : vector<8x128xf32>
    %82 = tpu.matmul %80, %81, %cst_28 {dimension_numbers = #tpu.dot_dimension_numbers<[1], [0], [0], [1], [0, 0, 1, 1], [], []>} : vector<8x32xbf16>, vector<32x128xbf16>, vector<8x128xf32> -> vector<8x128xf32>
    %83 = arith.addf %79, %82 : vector<8x128xf32>
    %84 = vector.extract_strided_slice %83 {offsets = [0, 0], sizes = [8, 32], strides = [1, 1]} : vector<8x128xf32> to vector<8x32xf32>
    %85 = arith.negf %84 : vector<8x32xf32>
    %86 = math.exp %85 : vector<8x32xf32>
    %cst_29 = arith.constant 1.000000e+00 : f32
    %87 = vector.broadcast %cst_29 : f32 to vector<8x32xf32>
    %88 = arith.addf %87, %86 : vector<8x32xf32>
    %89 = arith.divf %87, %88 : vector<8x32xf32>
    %90 = vector.extract_strided_slice %83 {offsets = [0, 32], sizes = [8, 32], strides = [1, 1]} : vector<8x128xf32> to vector<8x32xf32>
    %91 = arith.negf %90 : vector<8x32xf32>
    %92 = math.exp %91 : vector<8x32xf32>
    %cst_30 = arith.constant 1.000000e+00 : f32
    %93 = vector.broadcast %cst_30 : f32 to vector<8x32xf32>
    %94 = arith.addf %93, %92 : vector<8x32xf32>
    %95 = arith.divf %93, %94 : vector<8x32xf32>
    %96 = vector.extract_strided_slice %83 {offsets = [0, 64], sizes = [8, 32], strides = [1, 1]} : vector<8x128xf32> to vector<8x32xf32>
    %97 = math.tanh %96 : vector<8x32xf32>
    %98 = vector.extract_strided_slice %83 {offsets = [0, 96], sizes = [8, 32], strides = [1, 1]} : vector<8x128xf32> to vector<8x32xf32>
    %99 = arith.negf %98 : vector<8x32xf32>
    %100 = math.exp %99 : vector<8x32xf32>
    %cst_31 = arith.constant 1.000000e+00 : f32
    %101 = vector.broadcast %cst_31 : f32 to vector<8x32xf32>
    %102 = arith.addf %101, %100 : vector<8x32xf32>
    %103 = arith.divf %101, %102 : vector<8x32xf32>
    %104 = arith.mulf %95, %70 : vector<8x32xf32>
    %105 = arith.mulf %89, %97 : vector<8x32xf32>
    %106 = arith.addf %104, %105 : vector<8x32xf32>
    %107 = math.tanh %106 : vector<8x32xf32>
    %108 = arith.mulf %103, %107 : vector<8x32xf32>
    %109 = arith.index_cast %c2_i32 : i32 to index
    %c0_32 = arith.constant 0 : index
    %c0_33 = arith.constant 0 : index
    %110 = vector.load %arg3[%109, %c0_32, %c0_33] : memref<8x8x32xf32, #tpu.memory_space<vmem>>, vector<1x8x32xf32>
    %111 = vector.shape_cast %110 : vector<1x8x32xf32> to vector<8x32xf32>
    %112 = vector.shape_cast %108 : vector<8x32xf32> to vector<1x8x32xf32>
    tpu.vector_store %arg3[%109, %c0_32, %c0_33], %112 {strides = array<i32>} : memref<8x8x32xf32, #tpu.memory_space<vmem>>, vector<1x8x32xf32>,
    %c3_i32 = arith.constant 3 : i32
    %113 = arith.index_cast %c3_i32 : i32 to index
    %c0_34 = arith.constant 0 : index
    %c0_35 = arith.constant 0 : index
    %114 = vector.load %arg1[%113, %c0_34, %c0_35] : memref<8x8x128xf32, #tpu.memory_space<vmem>>, vector<1x8x128xf32>
    %115 = vector.shape_cast %114 : vector<1x8x128xf32> to vector<8x128xf32>
    %116 = arith.truncf %108 : vector<8x32xf32> to vector<8x32xbf16>
    %c0_36 = arith.constant 0 : index
    %c0_37 = arith.constant 0 : index
    %117 = vector.load %arg2[%c0_36, %c0_37] : memref<32x128xbf16, #tpu.memory_space<vmem>>, vector<32x128xbf16>
    %cst_38 = arith.constant dense<0.000000e+00> : vector<8x128xf32>
    %118 = tpu.matmul %116, %117, %cst_38 {dimension_numbers = #tpu.dot_dimension_numbers<[1], [0], [0], [1], [0, 0, 1, 1], [], []>} : vector<8x32xbf16>, vector<32x128xbf16>, vector<8x128xf32> -> vector<8x128xf32>
    %119 = arith.addf %115, %118 : vector<8x128xf32>
    %120 = vector.extract_strided_slice %119 {offsets = [0, 0], sizes = [8, 32], strides = [1, 1]} : vector<8x128xf32> to vector<8x32xf32>
    %121 = arith.negf %120 : vector<8x32xf32>
    %122 = math.exp %121 : vector<8x32xf32>
    %cst_39 = arith.constant 1.000000e+00 : f32
    %123 = vector.broadcast %cst_39 : f32 to vector<8x32xf32>
    %124 = arith.addf %123, %122 : vector<8x32xf32>
    %125 = arith.divf %123, %124 : vector<8x32xf32>
    %126 = vector.extract_strided_slice %119 {offsets = [0, 32], sizes = [8, 32], strides = [1, 1]} : vector<8x128xf32> to vector<8x32xf32>
    %127 = arith.negf %126 : vector<8x32xf32>
    %128 = math.exp %127 : vector<8x32xf32>
    %cst_40 = arith.constant 1.000000e+00 : f32
    %129 = vector.broadcast %cst_40 : f32 to vector<8x32xf32>
    %130 = arith.addf %129, %128 : vector<8x32xf32>
    %131 = arith.divf %129, %130 : vector<8x32xf32>
    %132 = vector.extract_strided_slice %119 {offsets = [0, 64], sizes = [8, 32], strides = [1, 1]} : vector<8x128xf32> to vector<8x32xf32>
    %133 = math.tanh %132 : vector<8x32xf32>
    %134 = vector.extract_strided_slice %119 {offsets = [0, 96], sizes = [8, 32], strides = [1, 1]} : vector<8x128xf32> to vector<8x32xf32>
    %135 = arith.negf %134 : vector<8x32xf32>
    %136 = math.exp %135 : vector<8x32xf32>
    %cst_41 = arith.constant 1.000000e+00 : f32
    %137 = vector.broadcast %cst_41 : f32 to vector<8x32xf32>
    %138 = arith.addf %137, %136 : vector<8x32xf32>
    %139 = arith.divf %137, %138 : vector<8x32xf32>
    %140 = arith.mulf %131, %106 : vector<8x32xf32>
    %141 = arith.mulf %125, %133 : vector<8x32xf32>
    %142 = arith.addf %140, %141 : vector<8x32xf32>
    %143 = math.tanh %142 : vector<8x32xf32>
    %144 = arith.mulf %139, %143 : vector<8x32xf32>
    %145 = arith.index_cast %c3_i32 : i32 to index
    %c0_42 = arith.constant 0 : index
    %c0_43 = arith.constant 0 : index
    %146 = vector.load %arg3[%145, %c0_42, %c0_43] : memref<8x8x32xf32, #tpu.memory_space<vmem>>, vector<1x8x32xf32>
    %147 = vector.shape_cast %146 : vector<1x8x32xf32> to vector<8x32xf32>
    %148 = vector.shape_cast %144 : vector<8x32xf32> to vector<1x8x32xf32>
    tpu.vector_store %arg3[%145, %c0_42, %c0_43], %148 {strides = array<i32>} : memref<8x8x32xf32, #tpu.memory_space<vmem>>, vector<1x8x32xf32>,
    %c4_i32 = arith.constant 4 : i32
    %149 = arith.index_cast %c4_i32 : i32 to index
    %c0_44 = arith.constant 0 : index
    %c0_45 = arith.constant 0 : index
    %150 = vector.load %arg1[%149, %c0_44, %c0_45] : memref<8x8x128xf32, #tpu.memory_space<vmem>>, vector<1x8x128xf32>
    %151 = vector.shape_cast %150 : vector<1x8x128xf32> to vector<8x128xf32>
    %152 = arith.truncf %144 : vector<8x32xf32> to vector<8x32xbf16>
    %c0_46 = arith.constant 0 : index
    %c0_47 = arith.constant 0 : index
    %153 = vector.load %arg2[%c0_46, %c0_47] : memref<32x128xbf16, #tpu.memory_space<vmem>>, vector<32x128xbf16>
    %cst_48 = arith.constant dense<0.000000e+00> : vector<8x128xf32>
    %154 = tpu.matmul %152, %153, %cst_48 {dimension_numbers = #tpu.dot_dimension_numbers<[1], [0], [0], [1], [0, 0, 1, 1], [], []>} : vector<8x32xbf16>, vector<32x128xbf16>, vector<8x128xf32> -> vector<8x128xf32>
    %155 = arith.addf %151, %154 : vector<8x128xf32>
    %156 = vector.extract_strided_slice %155 {offsets = [0, 0], sizes = [8, 32], strides = [1, 1]} : vector<8x128xf32> to vector<8x32xf32>
    %157 = arith.negf %156 : vector<8x32xf32>
    %158 = math.exp %157 : vector<8x32xf32>
    %cst_49 = arith.constant 1.000000e+00 : f32
    %159 = vector.broadcast %cst_49 : f32 to vector<8x32xf32>
    %160 = arith.addf %159, %158 : vector<8x32xf32>
    %161 = arith.divf %159, %160 : vector<8x32xf32>
    %162 = vector.extract_strided_slice %155 {offsets = [0, 32], sizes = [8, 32], strides = [1, 1]} : vector<8x128xf32> to vector<8x32xf32>
    %163 = arith.negf %162 : vector<8x32xf32>
    %164 = math.exp %163 : vector<8x32xf32>
    %cst_50 = arith.constant 1.000000e+00 : f32
    %165 = vector.broadcast %cst_50 : f32 to vector<8x32xf32>
    %166 = arith.addf %165, %164 : vector<8x32xf32>
    %167 = arith.divf %165, %166 : vector<8x32xf32>
    %168 = vector.extract_strided_slice %155 {offsets = [0, 64], sizes = [8, 32], strides = [1, 1]} : vector<8x128xf32> to vector<8x32xf32>
    %169 = math.tanh %168 : vector<8x32xf32>
    %170 = vector.extract_strided_slice %155 {offsets = [0, 96], sizes = [8, 32], strides = [1, 1]} : vector<8x128xf32> to vector<8x32xf32>
    %171 = arith.negf %170 : vector<8x32xf32>
    %172 = math.exp %171 : vector<8x32xf32>
    %cst_51 = arith.constant 1.000000e+00 : f32
    %173 = vector.broadcast %cst_51 : f32 to vector<8x32xf32>
    %174 = arith.addf %173, %172 : vector<8x32xf32>
    %175 = arith.divf %173, %174 : vector<8x32xf32>
    %176 = arith.mulf %167, %142 : vector<8x32xf32>
    %177 = arith.mulf %161, %169 : vector<8x32xf32>
    %178 = arith.addf %176, %177 : vector<8x32xf32>
    %179 = math.tanh %178 : vector<8x32xf32>
    %180 = arith.mulf %175, %179 : vector<8x32xf32>
    %181 = arith.index_cast %c4_i32 : i32 to index
    %c0_52 = arith.constant 0 : index
    %c0_53 = arith.constant 0 : index
    %182 = vector.load %arg3[%181, %c0_52, %c0_53] : memref<8x8x32xf32, #tpu.memory_space<vmem>>, vector<1x8x32xf32>
    %183 = vector.shape_cast %182 : vector<1x8x32xf32> to vector<8x32xf32>
    %184 = vector.shape_cast %180 : vector<8x32xf32> to vector<1x8x32xf32>
    tpu.vector_store %arg3[%181, %c0_52, %c0_53], %184 {strides = array<i32>} : memref<8x8x32xf32, #tpu.memory_space<vmem>>, vector<1x8x32xf32>,
    %c5_i32 = arith.constant 5 : i32
    %185 = arith.index_cast %c5_i32 : i32 to index
    %c0_54 = arith.constant 0 : index
    %c0_55 = arith.constant 0 : index
    %186 = vector.load %arg1[%185, %c0_54, %c0_55] : memref<8x8x128xf32, #tpu.memory_space<vmem>>, vector<1x8x128xf32>
    %187 = vector.shape_cast %186 : vector<1x8x128xf32> to vector<8x128xf32>
    %188 = arith.truncf %180 : vector<8x32xf32> to vector<8x32xbf16>
    %c0_56 = arith.constant 0 : index
    %c0_57 = arith.constant 0 : index
    %189 = vector.load %arg2[%c0_56, %c0_57] : memref<32x128xbf16, #tpu.memory_space<vmem>>, vector<32x128xbf16>
    %cst_58 = arith.constant dense<0.000000e+00> : vector<8x128xf32>
    %190 = tpu.matmul %188, %189, %cst_58 {dimension_numbers = #tpu.dot_dimension_numbers<[1], [0], [0], [1], [0, 0, 1, 1], [], []>} : vector<8x32xbf16>, vector<32x128xbf16>, vector<8x128xf32> -> vector<8x128xf32>
    %191 = arith.addf %187, %190 : vector<8x128xf32>
    %192 = vector.extract_strided_slice %191 {offsets = [0, 0], sizes = [8, 32], strides = [1, 1]} : vector<8x128xf32> to vector<8x32xf32>
    %193 = arith.negf %192 : vector<8x32xf32>
    %194 = math.exp %193 : vector<8x32xf32>
    %cst_59 = arith.constant 1.000000e+00 : f32
    %195 = vector.broadcast %cst_59 : f32 to vector<8x32xf32>
    %196 = arith.addf %195, %194 : vector<8x32xf32>
    %197 = arith.divf %195, %196 : vector<8x32xf32>
    %198 = vector.extract_strided_slice %191 {offsets = [0, 32], sizes = [8, 32], strides = [1, 1]} : vector<8x128xf32> to vector<8x32xf32>
    %199 = arith.negf %198 : vector<8x32xf32>
    %200 = math.exp %199 : vector<8x32xf32>
    %cst_60 = arith.constant 1.000000e+00 : f32
    %201 = vector.broadcast %cst_60 : f32 to vector<8x32xf32>
    %202 = arith.addf %201, %200 : vector<8x32xf32>
    %203 = arith.divf %201, %202 : vector<8x32xf32>
    %204 = vector.extract_strided_slice %191 {offsets = [0, 64], sizes = [8, 32], strides = [1, 1]} : vector<8x128xf32> to vector<8x32xf32>
    %205 = math.tanh %204 : vector<8x32xf32>
    %206 = vector.extract_strided_slice %191 {offsets = [0, 96], sizes = [8, 32], strides = [1, 1]} : vector<8x128xf32> to vector<8x32xf32>
    %207 = arith.negf %206 : vector<8x32xf32>
    %208 = math.exp %207 : vector<8x32xf32>
    %cst_61 = arith.constant 1.000000e+00 : f32
    %209 = vector.broadcast %cst_61 : f32 to vector<8x32xf32>
    %210 = arith.addf %209, %208 : vector<8x32xf32>
    %211 = arith.divf %209, %210 : vector<8x32xf32>
    %212 = arith.mulf %203, %178 : vector<8x32xf32>
    %213 = arith.mulf %197, %205 : vector<8x32xf32>
    %214 = arith.addf %212, %213 : vector<8x32xf32>
    %215 = math.tanh %214 : vector<8x32xf32>
    %216 = arith.mulf %211, %215 : vector<8x32xf32>
    %217 = arith.index_cast %c5_i32 : i32 to index
    %c0_62 = arith.constant 0 : index
    %c0_63 = arith.constant 0 : index
    %218 = vector.load %arg3[%217, %c0_62, %c0_63] : memref<8x8x32xf32, #tpu.memory_space<vmem>>, vector<1x8x32xf32>
    %219 = vector.shape_cast %218 : vector<1x8x32xf32> to vector<8x32xf32>
    %220 = vector.shape_cast %216 : vector<8x32xf32> to vector<1x8x32xf32>
    tpu.vector_store %arg3[%217, %c0_62, %c0_63], %220 {strides = array<i32>} : memref<8x8x32xf32, #tpu.memory_space<vmem>>, vector<1x8x32xf32>,
    %c6_i32 = arith.constant 6 : i32
    %221 = arith.index_cast %c6_i32 : i32 to index
    %c0_64 = arith.constant 0 : index
    %c0_65 = arith.constant 0 : index
    %222 = vector.load %arg1[%221, %c0_64, %c0_65] : memref<8x8x128xf32, #tpu.memory_space<vmem>>, vector<1x8x128xf32>
    %223 = vector.shape_cast %222 : vector<1x8x128xf32> to vector<8x128xf32>
    %224 = arith.truncf %216 : vector<8x32xf32> to vector<8x32xbf16>
    %c0_66 = arith.constant 0 : index
    %c0_67 = arith.constant 0 : index
    %225 = vector.load %arg2[%c0_66, %c0_67] : memref<32x128xbf16, #tpu.memory_space<vmem>>, vector<32x128xbf16>
    %cst_68 = arith.constant dense<0.000000e+00> : vector<8x128xf32>
    %226 = tpu.matmul %224, %225, %cst_68 {dimension_numbers = #tpu.dot_dimension_numbers<[1], [0], [0], [1], [0, 0, 1, 1], [], []>} : vector<8x32xbf16>, vector<32x128xbf16>, vector<8x128xf32> -> vector<8x128xf32>
    %227 = arith.addf %223, %226 : vector<8x128xf32>
    %228 = vector.extract_strided_slice %227 {offsets = [0, 0], sizes = [8, 32], strides = [1, 1]} : vector<8x128xf32> to vector<8x32xf32>
    %229 = arith.negf %228 : vector<8x32xf32>
    %230 = math.exp %229 : vector<8x32xf32>
    %cst_69 = arith.constant 1.000000e+00 : f32
    %231 = vector.broadcast %cst_69 : f32 to vector<8x32xf32>
    %232 = arith.addf %231, %230 : vector<8x32xf32>
    %233 = arith.divf %231, %232 : vector<8x32xf32>
    %234 = vector.extract_strided_slice %227 {offsets = [0, 32], sizes = [8, 32], strides = [1, 1]} : vector<8x128xf32> to vector<8x32xf32>
    %235 = arith.negf %234 : vector<8x32xf32>
    %236 = math.exp %235 : vector<8x32xf32>
    %cst_70 = arith.constant 1.000000e+00 : f32
    %237 = vector.broadcast %cst_70 : f32 to vector<8x32xf32>
    %238 = arith.addf %237, %236 : vector<8x32xf32>
    %239 = arith.divf %237, %238 : vector<8x32xf32>
    %240 = vector.extract_strided_slice %227 {offsets = [0, 64], sizes = [8, 32], strides = [1, 1]} : vector<8x128xf32> to vector<8x32xf32>
    %241 = math.tanh %240 : vector<8x32xf32>
    %242 = vector.extract_strided_slice %227 {offsets = [0, 96], sizes = [8, 32], strides = [1, 1]} : vector<8x128xf32> to vector<8x32xf32>
    %243 = arith.negf %242 : vector<8x32xf32>
    %244 = math.exp %243 : vector<8x32xf32>
    %cst_71 = arith.constant 1.000000e+00 : f32
    %245 = vector.broadcast %cst_71 : f32 to vector<8x32xf32>
    %246 = arith.addf %245, %244 : vector<8x32xf32>
    %247 = arith.divf %245, %246 : vector<8x32xf32>
    %248 = arith.mulf %239, %214 : vector<8x32xf32>
    %249 = arith.mulf %233, %241 : vector<8x32xf32>
    %250 = arith.addf %248, %249 : vector<8x32xf32>
    %251 = math.tanh %250 : vector<8x32xf32>
    %252 = arith.mulf %247, %251 : vector<8x32xf32>
    %253 = arith.index_cast %c6_i32 : i32 to index
    %c0_72 = arith.constant 0 : index
    %c0_73 = arith.constant 0 : index
    %254 = vector.load %arg3[%253, %c0_72, %c0_73] : memref<8x8x32xf32, #tpu.memory_space<vmem>>, vector<1x8x32xf32>
    %255 = vector.shape_cast %254 : vector<1x8x32xf32> to vector<8x32xf32>
    %256 = vector.shape_cast %252 : vector<8x32xf32> to vector<1x8x32xf32>
    tpu.vector_store %arg3[%253, %c0_72, %c0_73], %256 {strides = array<i32>} : memref<8x8x32xf32, #tpu.memory_space<vmem>>, vector<1x8x32xf32>,
    %c7_i32 = arith.constant 7 : i32
    %257 = arith.index_cast %c7_i32 : i32 to index
    %c0_74 = arith.constant 0 : index
    %c0_75 = arith.constant 0 : index
    %258 = vector.load %arg1[%257, %c0_74, %c0_75] : memref<8x8x128xf32, #tpu.memory_space<vmem>>, vector<1x8x128xf32>
    %259 = vector.shape_cast %258 : vector<1x8x128xf32> to vector<8x128xf32>
    %260 = arith.truncf %252 : vector<8x32xf32> to vector<8x32xbf16>
    %c0_76 = arith.constant 0 : index
    %c0_77 = arith.constant 0 : index
    %261 = vector.load %arg2[%c0_76, %c0_77] : memref<32x128xbf16, #tpu.memory_space<vmem>>, vector<32x128xbf16>
    %cst_78 = arith.constant dense<0.000000e+00> : vector<8x128xf32>
    %262 = tpu.matmul %260, %261, %cst_78 {dimension_numbers = #tpu.dot_dimension_numbers<[1], [0], [0], [1], [0, 0, 1, 1], [], []>} : vector<8x32xbf16>, vector<32x128xbf16>, vector<8x128xf32> -> vector<8x128xf32>
    %263 = arith.addf %259, %262 : vector<8x128xf32>
    %264 = vector.extract_strided_slice %263 {offsets = [0, 0], sizes = [8, 32], strides = [1, 1]} : vector<8x128xf32> to vector<8x32xf32>
    %265 = arith.negf %264 : vector<8x32xf32>
    %266 = math.exp %265 : vector<8x32xf32>
    %cst_79 = arith.constant 1.000000e+00 : f32
    %267 = vector.broadcast %cst_79 : f32 to vector<8x32xf32>
    %268 = arith.addf %267, %266 : vector<8x32xf32>
    %269 = arith.divf %267, %268 : vector<8x32xf32>
    %270 = vector.extract_strided_slice %263 {offsets = [0, 32], sizes = [8, 32], strides = [1, 1]} : vector<8x128xf32> to vector<8x32xf32>
    %271 = arith.negf %270 : vector<8x32xf32>
    %272 = math.exp %271 : vector<8x32xf32>
    %cst_80 = arith.constant 1.000000e+00 : f32
    %273 = vector.broadcast %cst_80 : f32 to vector<8x32xf32>
    %274 = arith.addf %273, %272 : vector<8x32xf32>
    %275 = arith.divf %273, %274 : vector<8x32xf32>
    %276 = vector.extract_strided_slice %263 {offsets = [0, 64], sizes = [8, 32], strides = [1, 1]} : vector<8x128xf32> to vector<8x32xf32>
    %277 = math.tanh %276 : vector<8x32xf32>
    %278 = vector.extract_strided_slice %263 {offsets = [0, 96], sizes = [8, 32], strides = [1, 1]} : vector<8x128xf32> to vector<8x32xf32>
    %279 = arith.negf %278 : vector<8x32xf32>
    %280 = math.exp %279 : vector<8x32xf32>
    %cst_81 = arith.constant 1.000000e+00 : f32
    %281 = vector.broadcast %cst_81 : f32 to vector<8x32xf32>
    %282 = arith.addf %281, %280 : vector<8x32xf32>
    %283 = arith.divf %281, %282 : vector<8x32xf32>
    %284 = arith.mulf %275, %250 : vector<8x32xf32>
    %285 = arith.mulf %269, %277 : vector<8x32xf32>
    %286 = arith.addf %284, %285 : vector<8x32xf32>
    %287 = math.tanh %286 : vector<8x32xf32>
    %288 = arith.mulf %283, %287 : vector<8x32xf32>
    %289 = arith.index_cast %c7_i32 : i32 to index
    %c0_82 = arith.constant 0 : index
    %c0_83 = arith.constant 0 : index
    %290 = vector.load %arg3[%289, %c0_82, %c0_83] : memref<8x8x32xf32, #tpu.memory_space<vmem>>, vector<1x8x32xf32>
    %291 = vector.shape_cast %290 : vector<1x8x32xf32> to vector<8x32xf32>
    %292 = vector.shape_cast %288 : vector<8x32xf32> to vector<1x8x32xf32>
    tpu.vector_store %arg3[%289, %c0_82, %c0_83], %292 {strides = array<i32>} : memref<8x8x32xf32, #tpu.memory_space<vmem>>, vector<1x8x32xf32>,
    %c8_i32 = arith.constant 8 : i32
    %c0_84 = arith.constant 0 : index
    %c0_85 = arith.constant 0 : index
    %293 = vector.load %arg4[%c0_84, %c0_85] : memref<8x32xf32, #tpu.memory_space<vmem>>, vector<8x32xf32>
    tpu.vector_store %arg4[%c0_84, %c0_85], %288 {strides = array<i32>} : memref<8x32xf32, #tpu.memory_space<vmem>>, vector<8x32xf32>,
    %c0_86 = arith.constant 0 : index
    %c0_87 = arith.constant 0 : index
    %294 = vector.load %arg5[%c0_86, %c0_87] : memref<8x32xf32, #tpu.memory_space<vmem>>, vector<8x32xf32>
    tpu.vector_store %arg5[%c0_86, %c0_87], %286 {strides = array<i32>} : memref<8x32xf32, #tpu.memory_space<vmem>>, vector<8x32xf32>,
    return
  }
  func.func @transform_0(%arg0: i32) -> (i32, i32, i32) {
    %c0_i32 = arith.constant 0 : i32
    %c0_i32_0 = arith.constant 0 : i32
    %c0_i32_1 = arith.constant 0 : i32
    return %arg0, %c0_i32, %c0_i32_0 : i32, i32, i32
  }
  func.func @transform_1(%arg0: i32) -> (i32, i32) {
    %c0_i32 = arith.constant 0 : i32
    %c0_i32_0 = arith.constant 0 : i32
    %c0_i32_1 = arith.constant 0 : i32
    return %c0_i32, %c0_i32_0 : i32, i32
  }
  func.func @transform_2(%arg0: i32) -> (i32, i32, i32) {
    %c0_i32 = arith.constant 0 : i32
    %c0_i32_0 = arith.constant 0 : i32
    %c0_i32_1 = arith.constant 0 : i32
    return %arg0, %c0_i32, %c0_i32_0 : i32, i32, i32
  }
}

module attributes {stable_mosaic.version = 11 : i64} {
  func.func @_matmul_bias_kernel(%arg0: i32, %arg1: memref<64x32xf32, #tpu.memory_space<vmem>>, %arg2: memref<32x16xbf16, #tpu.memory_space<vmem>>, %arg3: memref<1x16xf32, #tpu.memory_space<vmem>>, %arg4: memref<64x16xf32, #tpu.memory_space<vmem>>) attributes {dimension_semantics = [#tpu.dimension_semantics<parallel>], iteration_bounds = array<i64: 1>, scalar_prefetch = 0 : i64, scratch_operands = 0 : i64, tpu.core_type = #tpu.core_type<tc>, window_params = [{transform_indices = @transform_0, window_bounds = array<i64: 64, 32>}, {pipeline_mode = #tpu.pipeline_mode<synchronous>, transform_indices = @transform_1, window_bounds = array<i64: 32, 16>}, {pipeline_mode = #tpu.pipeline_mode<synchronous>, transform_indices = @transform_2, window_bounds = array<i64: 1, 16>}, {transform_indices = @transform_3, window_bounds = array<i64: 64, 16>}]} {
    %c0 = arith.constant 0 : index
    %c0_0 = arith.constant 0 : index
    %0 = vector.load %arg1[%c0, %c0_0] : memref<64x32xf32, #tpu.memory_space<vmem>>, vector<64x32xf32>
    %1 = arith.truncf %0 : vector<64x32xf32> to vector<64x32xbf16>
    %c0_1 = arith.constant 0 : index
    %c0_2 = arith.constant 0 : index
    %2 = vector.load %arg2[%c0_1, %c0_2] : memref<32x16xbf16, #tpu.memory_space<vmem>>, vector<32x16xbf16>
    %cst = arith.constant dense<0.000000e+00> : vector<64x16xf32>
    %3 = tpu.matmul %1, %2, %cst {dimension_numbers = #tpu.dot_dimension_numbers<[1], [0], [0], [1], [0, 0, 1, 1], [], []>} : vector<64x32xbf16>, vector<32x16xbf16>, vector<64x16xf32> -> vector<64x16xf32>
    %c0_3 = arith.constant 0 : index
    %c0_4 = arith.constant 0 : index
    %4 = vector.load %arg3[%c0_3, %c0_4] : memref<1x16xf32, #tpu.memory_space<vmem>>, vector<1x16xf32>
    %5 = vector.broadcast %4 : vector<1x16xf32> to vector<64x16xf32>
    %6 = arith.addf %3, %5 : vector<64x16xf32>
    %c0_5 = arith.constant 0 : index
    %c0_6 = arith.constant 0 : index
    %7 = vector.load %arg4[%c0_5, %c0_6] : memref<64x16xf32, #tpu.memory_space<vmem>>, vector<64x16xf32>
    tpu.vector_store %arg4[%c0_5, %c0_6], %6 {strides = array<i32>} : memref<64x16xf32, #tpu.memory_space<vmem>>, vector<64x16xf32>,
    return
  }
  func.func @transform_0(%arg0: i32) -> (i32, i32) {
    %c0_i32 = arith.constant 0 : i32
    %c0_i32_0 = arith.constant 0 : i32
    return %arg0, %c0_i32 : i32, i32
  }
  func.func @transform_1(%arg0: i32) -> (i32, i32) {
    %c0_i32 = arith.constant 0 : i32
    %c0_i32_0 = arith.constant 0 : i32
    %c0_i32_1 = arith.constant 0 : i32
    return %c0_i32, %c0_i32_0 : i32, i32
  }
  func.func @transform_2(%arg0: i32) -> (i32, i32) {
    %c0_i32 = arith.constant 0 : i32
    %c0_i32_0 = arith.constant 0 : i32
    %c0_i32_1 = arith.constant 0 : i32
    return %c0_i32, %c0_i32_0 : i32, i32
  }
  func.func @transform_3(%arg0: i32) -> (i32, i32) {
    %c0_i32 = arith.constant 0 : i32
    %c0_i32_0 = arith.constant 0 : i32
    return %arg0, %c0_i32 : i32, i32
  }
}

</mosaic_0001>

<llo_original>
// kernel: apc_lstm_forward.7
$region0: #{apc_lstm_forward.7}
  #allocation0 [shape = 'u32[]', space=smem, size = 0x4, offset = 0x4, fixed_abs, tag = 'smem constant byte address 0x4 - core index']
  #allocation1 [shape = 'u32[72,128]{1,0:T(1,128)}', space=vmem, size = 0x9000, scoped, tag = 'internal scratch']
  %s0 = inlined_call_operand.vmem [shape: f32[64,32], index: 0, kind: input, shape index: {}]
  %s1 = inlined_call_operand.vmem [shape: bf16[32,128], index: 1, kind: input, shape index: {}]
  %s2 = inlined_call_operand.vmem [shape: f32[1,128], index: 2, kind: input, shape index: {}]
  %s3 = inlined_call_operand.vmem [shape: f32[64,128], index: 3, kind: output, shape index: {}]
  %s4 = sld [smem:[#allocation0]]
  $region22: #{apc_lstm_forward.7} parent=0
    _
  %s6 = ssub.s32 1, %s4
  %s7 = scalar_select 0, %s6, %s4
  // Predicated region
  $region2: #{apc_lstm_forward.7} parent=0 // pred_check
    _
  $region3: #{apc_lstm_forward.7} parent=0 // pred_check_branch
    %9 = sbr.rel (0) target = $region5
  $region4: #{apc_lstm_forward.7} parent=0 // pred_region
    _
  $region5: #{apc_lstm_forward.7} parent=0 // pred_fallthru
    _
  // Predicated region
  $region6: #{apc_lstm_forward.7} parent=0 // pred_check
    _
  $region7: #{apc_lstm_forward.7} parent=0 // pred_check_branch
    %11 = sbr.rel (0) target = $region9
  $region8: #{apc_lstm_forward.7} parent=0 // pred_region
    _
  $region9: #{apc_lstm_forward.7} parent=0 // pred_fallthru
    _
  // Predicated region
  $region10: #{apc_lstm_forward.7} parent=0 // pred_check
    _
  $region11: #{apc_lstm_forward.7} parent=0 // pred_check_branch
    %13 = sbr.rel (0) target = $region13
  $region12: #{apc_lstm_forward.7} parent=0 // pred_region
    _
  $region13: #{apc_lstm_forward.7} parent=0 // pred_fallthru
    _
  %v15 = vld [vmem:[%s0] sm:$0xff]
  %v16 = vld [vmem:[%s0 + $0x8] sm:$0xff]
  %v17 = vld [vmem:[%s0 + $0x10] sm:$0xff]
  %v18 = vld [vmem:[%s0 + $0x18] sm:$0xff]
  %v19 = vld [vmem:[%s0 + $0x20] sm:$0xff]
  %v20 = vld [vmem:[%s0 + $0x28] sm:$0xff]
  %v21 = vld [vmem:[%s0 + $0x30] sm:$0xff]
  %v22 = vld [vmem:[%s0 + $0x38] sm:$0xff]
  %v23 = vpack.c.bf16 %v16, %v15
  %v24 = vpack.c.bf16 %v18, %v17
  %v25 = vpack.c.bf16 %v20, %v19
  %v26 = vpack.c.bf16 %v22, %v21
  %v27 = vld [vmem:[%s1] sm:$0xf]
  %v28 = vld [vmem:[%s1 + $0x4] sm:$0xf]
  %v29 = vld [vmem:[%s1 + $0x8] sm:$0xf]
  %v30 = vld [vmem:[%s1 + $0xc] sm:$0xf]
  %v31 = vld [vmem:[%s2] sm:$0x1]
  %v33 = vperm.slane %v31, 0
  %v39 = vunpack.c.l.b16 %v27
  %v40 = vunpack.c.l.b16 %v28
  %v41 = vunpack.c.l.b16 %v29
  %v42 = vunpack.c.l.b16 %v30
  %v43 = vpack.c.b16 %v40, %v39
  %v44 = vpack.c.b16 %v42, %v41
  %vm47 = vcmask 261120
  %v49 = vsel %vm47, %v23, 0
  %v52 = vsel %vm47, %v24, 0
  %v55 = vsel %vm47, %v25, 0
  %v58 = vsel %vm47, %v26, 0
  %60 = vmatpush.bf16.msra.mxu0 0
  %61 = vmatpush.bf16.msra.mxu0 0
  %62 = vmatpush.bf16.msra.mxu0 0
  %63 = vmatpush.bf16.msra.mxu0 0
  %64 = vmatpush.bf16.msra.mxu0 0
  %65 = vmatpush.bf16.msra.mxu0 0
  %66 = vmatpush.bf16.msra.mxu0 %v44
  %67 = vmatpush.bf16.msra.mxu0 %v43
  %68 = vmatmul.bf16.gmra.mxu0 %v49
  %v69 = vpop.f32.mrf.mxu0
  %v70 = vadd.f32 %v33, %v69
  %v71 = vpop.f32.mrf.mxu0
  %v72 = vadd.f32 %v33, %v71
  %73 = vmatmul.bf16.gmra.mxu0 %v52
  %v74 = vpop.f32.mrf.mxu0
  %v75 = vadd.f32 %v33, %v74
  %v76 = vpop.f32.mrf.mxu0
  %v77 = vadd.f32 %v33, %v76
  %78 = vmatmul.bf16.gmra.mxu0 %v55
  %v79 = vpop.f32.mrf.mxu0
  %v80 = vadd.f32 %v33, %v79
  %v81 = vpop.f32.mrf.mxu0
  %v82 = vadd.f32 %v33, %v81
  %83 = vmatmul.bf16.gmra.mxu0 %v58
  %v84 = vpop.f32.mrf.mxu0
  %v85 = vadd.f32 %v33, %v84
  %v86 = vpop.f32.mrf.mxu0
  %v87 = vadd.f32 %v33, %v86
  %88 = vdwg.mxu0
  %89 = vst [vmem:[%s3] sm:$0xff] %v70
  %90 = vst [vmem:[%s3 + $0x8] sm:$0xff] %v72
  %91 = vst [vmem:[%s3 + $0x10] sm:$0xff] %v75
  %92 = vst [vmem:[%s3 + $0x18] sm:$0xff] %v77
  %93 = vst [vmem:[%s3 + $0x20] sm:$0xff] %v80
  %94 = vst [vmem:[%s3 + $0x28] sm:$0xff] %v82
  %95 = vst [vmem:[%s3 + $0x30] sm:$0xff] %v85
  %96 = vst [vmem:[%s3 + $0x38] sm:$0xff] %v87
  // Predicated region
  $region14: #{apc_lstm_forward.7} parent=0 // pred_check
    _
  $region15: #{apc_lstm_forward.7} parent=0 // pred_check_branch
    %98 = sbr.rel (0) target = $region17
  $region16: #{apc_lstm_forward.7} parent=0 // pred_region
    _
  $region17: #{apc_lstm_forward.7} parent=0 // pred_fallthru
    _
  // Predicated region
  $region18: #{apc_lstm_forward.7} parent=0 // pred_check
    _
  $region19: #{apc_lstm_forward.7} parent=0 // pred_check_branch
    %100 = sbr.rel (0) target = $region21
  $region20: #{apc_lstm_forward.7} parent=0 // pred_region
    _
  $region21: #{apc_lstm_forward.7} parent=0 // pred_fallthru
    _

// kernel: apc_lstm_forward.5
$region0: #{apc_lstm_forward.5}
  #allocation0 [shape = 'u32[]', space=smem, size = 0x4, offset = 0x4, fixed_abs, tag = 'smem constant byte address 0x4 - core index']
  #allocation1 [shape = 'u32[72,128]{1,0:T(1,128)}', space=vmem, size = 0x9000, scoped, tag = 'internal scratch']
  %s0 = inlined_call_operand.vmem [shape: f32[64,16], index: 0, kind: input, shape index: {}]
  %s1 = inlined_call_operand.vmem [shape: bf16[16,128], index: 1, kind: input, shape index: {}]
  %s2 = inlined_call_operand.vmem [shape: f32[1,128], index: 2, kind: input, shape index: {}]
  %s3 = inlined_call_operand.vmem [shape: f32[64,128], index: 3, kind: output, shape index: {}]
  %s4 = sld [smem:[#allocation0]]
  $region22: #{apc_lstm_forward.5} parent=0
    _
  %s6 = ssub.s32 1, %s4
  %s7 = scalar_select 0, %s6, %s4
  // Predicated region
  $region2: #{apc_lstm_forward.5} parent=0 // pred_check
    _
  $region3: #{apc_lstm_forward.5} parent=0 // pred_check_branch
    %9 = sbr.rel (0) target = $region5
  $region4: #{apc_lstm_forward.5} parent=0 // pred_region
    _
  $region5: #{apc_lstm_forward.5} parent=0 // pred_fallthru
    _
  // Predicated region
  $region6: #{apc_lstm_forward.5} parent=0 // pred_check
    _
  $region7: #{apc_lstm_forward.5} parent=0 // pred_check_branch
    %11 = sbr.rel (0) target = $region9
  $region8: #{apc_lstm_forward.5} parent=0 // pred_region
    _
  $region9: #{apc_lstm_forward.5} parent=0 // pred_fallthru
    _
  // Predicated region
  $region10: #{apc_lstm_forward.5} parent=0 // pred_check
    _
  $region11: #{apc_lstm_forward.5} parent=0 // pred_check_branch
    %13 = sbr.rel (0) target = $region13
  $region12: #{apc_lstm_forward.5} parent=0 // pred_region
    _
  $region13: #{apc_lstm_forward.5} parent=0 // pred_fallthru
    _
  %v15 = vld [vmem:[%s0] sm:$0xff]
  %v16 = vld [vmem:[%s0 + $0x8] sm:$0xff]
  %v17 = vld [vmem:[%s0 + $0x10] sm:$0xff]
  %v18 = vld [vmem:[%s0 + $0x18] sm:$0xff]
  %v19 = vld [vmem:[%s0 + $0x20] sm:$0xff]
  %v20 = vld [vmem:[%s0 + $0x28] sm:$0xff]
  %v21 = vld [vmem:[%s0 + $0x30] sm:$0xff]
  %v22 = vld [vmem:[%s0 + $0x38] sm:$0xff]
  %v23 = vpack.c.bf16 %v16, %v15
  %v24 = vpack.c.bf16 %v18, %v17
  %v25 = vpack.c.bf16 %v20, %v19
  %v26 = vpack.c.bf16 %v22, %v21
  %v27 = vld [vmem:[%s1] sm:$0xf]
  %v28 = vld [vmem:[%s1 + $0x4] sm:$0xf]
  %v29 = vld [vmem:[%s2] sm:$0x1]
  %v31 = vperm.slane %v29, 0
  %v35 = vunpack.c.l.b16 %v27
  %v36 = vunpack.c.l.b16 %v28
  %v37 = vpack.c.b16 %v36, %v35
  %vm39 = vcmask 130048
  %v41 = vsel %vm39, %v23, 0
  %v44 = vsel %vm39, %v24, 0
  %v47 = vsel %vm39, %v25, 0
  %v50 = vsel %vm39, %v26, 0
  %52 = vmatpush.bf16.msra.mxu0 0
  %53 = vmatpush.bf16.msra.mxu0 0
  %54 = vmatpush.bf16.msra.mxu0 0
  %55 = vmatpush.bf16.msra.mxu0 0
  %56 = vmatpush.bf16.msra.mxu0 0
  %57 = vmatpush.bf16.msra.mxu0 0
  %58 = vmatpush.bf16.msra.mxu0 0
  %59 = vmatpush.bf16.msra.mxu0 %v37
  %60 = vmatmul.bf16.gmra.mxu0 %v41
  %v61 = vpop.f32.mrf.mxu0
  %v62 = vadd.f32 %v31, %v61
  %v63 = vpop.f32.mrf.mxu0
  %v64 = vadd.f32 %v31, %v63
  %65 = vmatmul.bf16.gmra.mxu0 %v44
  %v66 = vpop.f32.mrf.mxu0
  %v67 = vadd.f32 %v31, %v66
  %v68 = vpop.f32.mrf.mxu0
  %v69 = vadd.f32 %v31, %v68
  %70 = vmatmul.bf16.gmra.mxu0 %v47
  %v71 = vpop.f32.mrf.mxu0
  %v72 = vadd.f32 %v31, %v71
  %v73 = vpop.f32.mrf.mxu0
  %v74 = vadd.f32 %v31, %v73
  %75 = vmatmul.bf16.gmra.mxu0 %v50
  %v76 = vpop.f32.mrf.mxu0
  %v77 = vadd.f32 %v31, %v76
  %v78 = vpop.f32.mrf.mxu0
  %v79 = vadd.f32 %v31, %v78
  %80 = vdwg.mxu0
  %81 = vst [vmem:[%s3] sm:$0xff] %v62
  %82 = vst [vmem:[%s3 + $0x8] sm:$0xff] %v64
  %83 = vst [vmem:[%s3 + $0x10] sm:$0xff] %v67
  %84 = vst [vmem:[%s3 + $0x18] sm:$0xff] %v69
  %85 = vst [vmem:[%s3 + $0x20] sm:$0xff] %v72
  %86 = vst [vmem:[%s3 + $0x28] sm:$0xff] %v74
  %87 = vst [vmem:[%s3 + $0x30] sm:$0xff] %v77
  %88 = vst [vmem:[%s3 + $0x38] sm:$0xff] %v79
  // Predicated region
  $region14: #{apc_lstm_forward.5} parent=0 // pred_check
    _
  $region15: #{apc_lstm_forward.5} parent=0 // pred_check_branch
    %90 = sbr.rel (0) target = $region17
  $region16: #{apc_lstm_forward.5} parent=0 // pred_region
    _
  $region17: #{apc_lstm_forward.5} parent=0 // pred_fallthru
    _
  // Predicated region
  $region18: #{apc_lstm_forward.5} parent=0 // pred_check
    _
  $region19: #{apc_lstm_forward.5} parent=0 // pred_check_branch
    %92 = sbr.rel (0) target = $region21
  $region20: #{apc_lstm_forward.5} parent=0 // pred_region
    _
  $region21: #{apc_lstm_forward.5} parent=0 // pred_fallthru
    _

// kernel: apc_lstm_forward.9
$region0: #{apc_lstm_forward.9}
  #allocation0 [shape = 'u32[]', space=smem, size = 0x4, offset = 0x4, fixed_abs, tag = 'smem constant byte address 0x4 - core index']
  #allocation1 [shape = 'u32[72,128]{1,0:T(1,128)}', space=vmem, size = 0x9000, scoped, tag = 'internal scratch']
  %s0 = inlined_call_operand.vmem [shape: f32[64,32], index: 0, kind: input, shape index: {}]
  %s1 = inlined_call_operand.vmem [shape: bf16[32,16], index: 1, kind: input, shape index: {}]
  %s2 = inlined_call_operand.vmem [shape: f32[1,16], index: 2, kind: input, shape index: {}]
  %s3 = inlined_call_operand.vmem [shape: f32[64,16], index: 3, kind: output, shape index: {}]
  %s4 = sld [smem:[#allocation0]]
  $region22: #{apc_lstm_forward.9} parent=0
    _
  %s6 = ssub.s32 1, %s4
  %s7 = scalar_select 0, %s6, %s4
  // Predicated region
  $region2: #{apc_lstm_forward.9} parent=0 // pred_check
    _
  $region3: #{apc_lstm_forward.9} parent=0 // pred_check_branch
    %9 = sbr.rel (0) target = $region5
  $region4: #{apc_lstm_forward.9} parent=0 // pred_region
    _
  $region5: #{apc_lstm_forward.9} parent=0 // pred_fallthru
    _
  // Predicated region
  $region6: #{apc_lstm_forward.9} parent=0 // pred_check
    _
  $region7: #{apc_lstm_forward.9} parent=0 // pred_check_branch
    %11 = sbr.rel (0) target = $region9
  $region8: #{apc_lstm_forward.9} parent=0 // pred_region
    _
  $region9: #{apc_lstm_forward.9} parent=0 // pred_fallthru
    _
  // Predicated region
  $region10: #{apc_lstm_forward.9} parent=0 // pred_check
    _
  $region11: #{apc_lstm_forward.9} parent=0 // pred_check_branch
    %13 = sbr.rel (0) target = $region13
  $region12: #{apc_lstm_forward.9} parent=0 // pred_region
    _
  $region13: #{apc_lstm_forward.9} parent=0 // pred_fallthru
    _
  %v15 = vld [vmem:[%s0] sm:$0xff]
  %v16 = vld [vmem:[%s0 + $0x8] sm:$0xff]
  %v17 = vld [vmem:[%s0 + $0x10] sm:$0xff]
  %v18 = vld [vmem:[%s0 + $0x18] sm:$0xff]
  %v19 = vld [vmem:[%s0 + $0x20] sm:$0xff]
  %v20 = vld [vmem:[%s0 + $0x28] sm:$0xff]
  %v21 = vld [vmem:[%s0 + $0x30] sm:$0xff]
  %v22 = vld [vmem:[%s0 + $0x38] sm:$0xff]
  %v23 = vpack.c.bf16 %v16, %v15
  %v24 = vpack.c.bf16 %v18, %v17
  %v25 = vpack.c.bf16 %v20, %v19
  %v26 = vpack.c.bf16 %v22, %v21
  %v27 = vld [vmem:[%s1] sm:$0xf]
  %v28 = vld [vmem:[%s1 + $0x4] sm:$0xf]
  %v29 = vld [vmem:[%s1 + $0x8] sm:$0xf]
  %v30 = vld [vmem:[%s1 + $0xc] sm:$0xf]
  %v31 = vld [vmem:[%s2] sm:$0x1]
  %v33 = vperm.slane %v31, 0
  %v39 = vunpack.c.l.b16 %v27
  %v40 = vunpack.c.l.b16 %v28
  %v41 = vunpack.c.l.b16 %v29
  %v42 = vunpack.c.l.b16 %v30
  %v43 = vpack.c.b16 %v40, %v39
  %v44 = vpack.c.b16 %v42, %v41
  %vm47 = vcmask 261120
  %v49 = vsel %vm47, %v23, 0
  %v52 = vsel %vm47, %v24, 0
  %v55 = vsel %vm47, %v25, 0
  %v58 = vsel %vm47, %v26, 0
  %60 = vmatpush.bf16.msra.mxu0 0
  %61 = vmatpush.bf16.msra.mxu0 0
  %62 = vmatpush.bf16.msra.mxu0 0
  %63 = vmatpush.bf16.msra.mxu0 0
  %64 = vmatpush.bf16.msra.mxu0 0
  %65 = vmatpush.bf16.msra.mxu0 0
  %66 = vmatpush.bf16.msra.mxu0 %v44
  %67 = vmatpush.bf16.msra.mxu0 %v43
  %68 = vmatmul.bf16.gmra.mxu0 %v49
  %v69 = vpop.f32.mrf.mxu0
  %v70 = vadd.f32 %v33, %v69
  %v71 = vpop.f32.mrf.mxu0
  %v72 = vadd.f32 %v33, %v71
  %73 = vmatmul.bf16.gmra.mxu0 %v52
  %v74 = vpop.f32.mrf.mxu0
  %v75 = vadd.f32 %v33, %v74
  %v76 = vpop.f32.mrf.mxu0
  %v77 = vadd.f32 %v33, %v76
  %78 = vmatmul.bf16.gmra.mxu0 %v55
  %v79 = vpop.f32.mrf.mxu0
  %v80 = vadd.f32 %v33, %v79
  %v81 = vpop.f32.mrf.mxu0
  %v82 = vadd.f32 %v33, %v81
  %83 = vmatmul.bf16.gmra.mxu0 %v58
  %v84 = vpop.f32.mrf.mxu0
  %v85 = vadd.f32 %v33, %v84
  %v86 = vpop.f32.mrf.mxu0
  %v87 = vadd.f32 %v33, %v86
  %88 = vdwg.mxu0
  %vm89 = vcmask 130048
  %90 = vst.msk [vmem:[%s3] sm:$0xff] %vm89, %v70
  %91 = vst.msk [vmem:[%s3 + $0x8] sm:$0xff] %vm89, %v72
  %92 = vst.msk [vmem:[%s3 + $0x10] sm:$0xff] %vm89, %v75
  %93 = vst.msk [vmem:[%s3 + $0x18] sm:$0xff] %vm89, %v77
  %94 = vst.msk [vmem:[%s3 + $0x20] sm:$0xff] %vm89, %v80
  %95 = vst.msk [vmem:[%s3 + $0x28] sm:$0xff] %vm89, %v82
  %96 = vst.msk [vmem:[%s3 + $0x30] sm:$0xff] %vm89, %v85
  %97 = vst.msk [vmem:[%s3 + $0x38] sm:$0xff] %vm89, %v87
  // Predicated region
  $region14: #{apc_lstm_forward.9} parent=0 // pred_check
    _
  $region15: #{apc_lstm_forward.9} parent=0 // pred_check_branch
    %99 = sbr.rel (0) target = $region17
  $region16: #{apc_lstm_forward.9} parent=0 // pred_region
    _
  $region17: #{apc_lstm_forward.9} parent=0 // pred_fallthru
    _
  // Predicated region
  $region18: #{apc_lstm_forward.9} parent=0 // pred_check
    _
  $region19: #{apc_lstm_forward.9} parent=0 // pred_check_branch
    %101 = sbr.rel (0) target = $region21
  $region20: #{apc_lstm_forward.9} parent=0 // pred_region
    _
  $region21: #{apc_lstm_forward.9} parent=0 // pred_fallthru
    _

// kernel: apc_lstm_forward.6
$region0: #{apc_lstm_forward.6}
  #allocation0 [shape = 'u32[]', space=smem, size = 0x4, offset = 0x4, fixed_abs, tag = 'smem constant byte address 0x4 - core index']
  #allocation1 [shape = 'u32[72,128]{1,0:T(1,128)}', space=vmem, size = 0x9000, scoped, tag = 'internal scratch']
  #allocation2 [shape = 'f32[8,32]{1,0:T(8,128)}', space=vmem, size = 0x1000, scoped, tag = 'scratch operand']
  #allocation3 [shape = 'f32[8,32]{1,0:T(8,128)}', space=vmem, size = 0x1000, scoped, tag = 'scratch operand']
  %s0 = inlined_call_operand.vmem [shape: f32[8,8,128], index: 0, kind: input, shape index: {}]
  %s1 = inlined_call_operand.vmem [shape: bf16[32,128], index: 1, kind: input, shape index: {}]
  %s2 = inlined_call_operand.vmem [shape: f32[8,8,32], index: 2, kind: output, shape index: {}]
  %s3 = sld [smem:[#allocation0]]
  $region22: #{apc_lstm_forward.6} parent=0
    _
  %s5 = ssub.s32 1, %s3
  %s6 = scalar_select 0, %s5, %s3
  // Predicated region
  $region2: #{apc_lstm_forward.6} parent=0 // pred_check
    _
  $region3: #{apc_lstm_forward.6} parent=0 // pred_check_branch
    %8 = sbr.rel (0) target = $region5
  $region4: #{apc_lstm_forward.6} parent=0 // pred_region
    _
  $region5: #{apc_lstm_forward.6} parent=0 // pred_fallthru
    _
  // Predicated region
  $region6: #{apc_lstm_forward.6} parent=0 // pred_check
    _
  $region7: #{apc_lstm_forward.6} parent=0 // pred_check_branch
    %10 = sbr.rel (0) target = $region9
  $region8: #{apc_lstm_forward.6} parent=0 // pred_region
    _
  $region9: #{apc_lstm_forward.6} parent=0 // pred_fallthru
    _
  %p12 = scmp.eq.s32.totalorder 0, 0
  // Predicated region
  $region10: #{apc_lstm_forward.6} parent=0 // pred_check
    %p13 = pneg %p12
  $region11: #{apc_lstm_forward.6} parent=0 // pred_check_branch
    %15 = sbr.rel (%p13) target = $region13
  $region12: #{apc_lstm_forward.6} parent=0 // pred_region
    %vm16 = vcmask 261120
    %17 = vst.msk [vmem:[#allocation2] sm:$0xff] %vm16, 0.0
    %18 = vst.msk [vmem:[#allocation3] sm:$0xff] %vm16, 0.0
  $region13: #{apc_lstm_forward.6} parent=0 // pred_fallthru
    _
  %v19 = vld [vmem:[#allocation2] sm:$0xff]
  %v20 = vld [vmem:[#allocation3] sm:$0xff]
  %v21 = vld [vmem:[%s0] sm:$0xff]
  %v22 = vpack.c.bf16 %v19, %v19
  %v23 = vld [vmem:[%s1] sm:$0xf]
  %v24 = vld [vmem:[%s1 + $0x4] sm:$0xf]
  %v25 = vld [vmem:[%s1 + $0x8] sm:$0xf]
  %v26 = vld [vmem:[%s1 + $0xc] sm:$0xf]
  %v31 = vunpack.c.l.b16 %v23
  %v32 = vunpack.c.l.b16 %v24
  %v33 = vunpack.c.l.b16 %v25
  %v34 = vunpack.c.l.b16 %v26
  %v35 = vpack.c.b16 %v32, %v31
  %v36 = vpack.c.b16 %v34, %v33
  %vm39 = vcmask 261120
  %v41 = vsel %vm39, %v22, 0
  %43 = vmatpush.bf16.msra.mxu0 0
  %44 = vmatpush.bf16.msra.mxu0 0
  %45 = vmatpush.bf16.msra.mxu0 0
  %46 = vmatpush.bf16.msra.mxu0 0
  %47 = vmatpush.bf16.msra.mxu0 0
  %48 = vmatpush.bf16.msra.mxu0 0
  %49 = vmatpush.bf16.msra.mxu0 %v36
  %50 = vmatpush.bf16.msra.mxu0 %v35
  %51 = vmatmul.bf16.gmra.mxu0 %v41
  %v52 = vpop.f32.mrf.mxu0
  %v53 = vadd.f32 0.0, %v52
  %v54 = vpop.f32.mrf.mxu0
  %55 = vdwg.mxu0
  %v56 = vadd.f32 %v21, %v53
  %v57 = vxor.u32 %v56, 2147483648
  %v58 = vmul.f32 %v57, 1.442695
  %v59 = vpow.pop %v58
  %v60 = vadd.f32 %v59, 1.0
  %v61 = vrcp.pop %v60
  %v62 = vmul.f32 %v60, %v61
  %v63 = vsub.f32 1.0, %v62
  %v64 = vmul.f32 %v61, %v63
  %v65 = vadd.f32 %v61, %v64
  %vm66 = vweird.f32 %v60
  %vm67 = vweird.f32 %v61
  %vm68 = vmor %vm66, %vm67
  %v69 = vsel %vm68, %v61, %v65
  %v70 = vand.u32 2147483647, %v60
  %vm71 = vcmp.eq.f32.partialorder %v70, 8.507059e+37
  %v72 = vand.u32 %v60, 2147483648
  %v73 = vor.u32 1.1754944e-38, %v72
  %v74 = vsel %vm71, %v73, %v69
  %v75 = vmul.f32 1.0, %v74
  %v76 = vtanh.pop %v56
  %78 = vrot.lane.b32.xlu0 %v20, 32
  %v79 = vpop.permute.xlu0 %78
  %v81 = vmul.f32 %v75, %v79
  %83 = vrot.lane.b32.xlu0 %v76, 64
  %v84 = vpop.permute.xlu0 %83
  %v86 = vmul.f32 %v75, %v84
  %88 = vrot.lane.b32.xlu0 %v86, 32
  %v89 = vpop.permute.xlu0 %88
  %v91 = vadd.f32 %v81, %v89
  %v92 = vtanh.pop %v91
  %94 = vrot.lane.b32.xlu0 %v92, 64
  %v95 = vpop.permute.xlu0 %94
  %v97 = vmul.f32 %v75, %v95
  %99 = vrot.lane.b32.xlu0 %v97, 32
  %v100 = vpop.permute.xlu0 %99
  %102 = vst.msk [vmem:[%s2] sm:$0xff] %vm39, %v100
  %s103 = scalar_lea.vmem %s0, 8
  %v104 = vld [vmem:[%s103] sm:$0xff]
  %v105 = vpack.c.bf16 %v97, %v97
  %v106 = vld [vmem:[%s1] sm:$0xf]
  %v107 = vld [vmem:[%s1 + $0x4] sm:$0xf]
  %v108 = vld [vmem:[%s1 + $0x8] sm:$0xf]
  %v109 = vld [vmem:[%s1 + $0xc] sm:$0xf]
  %111 = vrot.lane.b32.xlu0 %v105, 32
  %v112 = vpop.permute.xlu0 %111
  %v117 = vunpack.c.l.b16 %v106
  %v118 = vunpack.c.l.b16 %v107
  %v119 = vunpack.c.l.b16 %v108
  %v120 = vunpack.c.l.b16 %v109
  %v121 = vpack.c.b16 %v118, %v117
  %v122 = vpack.c.b16 %v120, %v119
  %v126 = vsel %vm39, %v112, 0
  %128 = vmatpush.bf16.msra.mxu0 0
  %129 = vmatpush.bf16.msra.mxu0 0
  %130 = vmatpush.bf16.msra.mxu0 0
  %131 = vmatpush.bf16.msra.mxu0 0
  %132 = vmatpush.bf16.msra.mxu0 0
  %133 = vmatpush.bf16.msra.mxu0 0
  %134 = vmatpush.bf16.msra.mxu0 %v122
  %135 = vmatpush.bf16.msra.mxu0 %v121
  %136 = vmatmul.bf16.gmra.mxu0 %v126
  %v137 = vpop.f32.mrf.mxu0
  %v138 = vadd.f32 0.0, %v137
  %v139 = vpop.f32.mrf.mxu0
  %140 = vdwg.mxu0
  %v141 = vadd.f32 %v104, %v138
  %v142 = vxor.u32 %v141, 2147483648
  %v143 = vmul.f32 %v142, 1.442695
  %v144 = vpow.pop %v143
  %v145 = vadd.f32 %v144, 1.0
  %v146 = vrcp.pop %v145
  %v147 = vmul.f32 %v145, %v146
  %v148 = vsub.f32 1.0, %v147
  %v149 = vmul.f32 %v146, %v148
  %v150 = vadd.f32 %v146, %v149
  %vm151 = vweird.f32 %v145
  %vm152 = vweird.f32 %v146
  %vm153 = vmor %vm151, %vm152
  %v154 = vsel %vm153, %v146, %v150
  %v155 = vand.u32 2147483647, %v145
  %vm156 = vcmp.eq.f32.partialorder %v155, 8.507059e+37
  %v157 = vand.u32 %v145, 2147483648
  %v158 = vor.u32 1.1754944e-38, %v157
  %v159 = vsel %vm156, %v158, %v154
  %v160 = vmul.f32 1.0, %v159
  %v161 = vtanh.pop %v141
  %v162 = vmul.f32 %v160, %v91
  %164 = vrot.lane.b32.xlu0 %v161, 64
  %v165 = vpop.permute.xlu0 %164
  %v167 = vmul.f32 %v160, %v165
  %169 = vrot.lane.b32.xlu0 %v167, 32
  %v170 = vpop.permute.xlu0 %169
  %v172 = vadd.f32 %v162, %v170
  %v173 = vtanh.pop %v172
  %175 = vrot.lane.b32.xlu0 %v173, 64
  %v176 = vpop.permute.xlu0 %175
  %v178 = vmul.f32 %v160, %v176
  %180 = vrot.lane.b32.xlu0 %v178, 32
  %v181 = vpop.permute.xlu0 %180
  %s183 = scalar_lea.vmem %s2, 8
  %184 = vst.msk [vmem:[%s183] sm:$0xff] %vm39, %v181
  %s185 = scalar_lea.vmem %s0, 16
  %v186 = vld [vmem:[%s185] sm:$0xff]
  %v187 = vpack.c.bf16 %v178, %v178
  %v188 = vld [vmem:[%s1] sm:$0xf]
  %v189 = vld [vmem:[%s1 + $0x4] sm:$0xf]
  %v190 = vld [vmem:[%s1 + $0x8] sm:$0xf]
  %v191 = vld [vmem:[%s1 + $0xc] sm:$0xf]
  %193 = vrot.lane.b32.xlu0 %v187, 32
  %v194 = vpop.permute.xlu0 %193
  %v199 = vunpack.c.l.b16 %v188
  %v200 = vunpack.c.l.b16 %v189
  %v201 = vunpack.c.l.b16 %v190
  %v202 = vunpack.c.l.b16 %v191
  %v203 = vpack.c.b16 %v200, %v199
  %v204 = vpack.c.b16 %v202, %v201
  %v208 = vsel %vm39, %v194, 0
  %210 = vmatpush.bf16.msra.mxu0 0
  %211 = vmatpush.bf16.msra.mxu0 0
  %212 = vmatpush.bf16.msra.mxu0 0
  %213 = vmatpush.bf16.msra.mxu0 0
  %214 = vmatpush.bf16.msra.mxu0 0
  %215 = vmatpush.bf16.msra.mxu0 0
  %216 = vmatpush.bf16.msra.mxu0 %v204
  %217 = vmatpush.bf16.msra.mxu0 %v203
  %218 = vmatmul.bf16.gmra.mxu0 %v208
  %v219 = vpop.f32.mrf.mxu0
  %v220 = vadd.f32 0.0, %v219
  %v221 = vpop.f32.mrf.mxu0
  %222 = vdwg.mxu0
  %v223 = vadd.f32 %v186, %v220
  %v224 = vxor.u32 %v223, 2147483648
  %v225 = vmul.f32 %v224, 1.442695
  %v226 = vpow.pop %v225
  %v227 = vadd.f32 %v226, 1.0
  %v228 = vrcp.pop %v227
  %v229 = vmul.f32 %v227, %v228
  %v230 = vsub.f32 1.0, %v229
  %v231 = vmul.f32 %v228, %v230
  %v232 = vadd.f32 %v228, %v231
  %vm233 = vweird.f32 %v227
  %vm234 = vweird.f32 %v228
  %vm235 = vmor %vm233, %vm234
  %v236 = vsel %vm235, %v228, %v232
  %v237 = vand.u32 2147483647, %v227
  %vm238 = vcmp.eq.f32.partialorder %v237, 8.507059e+37
  %v239 = vand.u32 %v227, 2147483648
  %v240 = vor.u32 1.1754944e-38, %v239
  %v241 = vsel %vm238, %v240, %v236
  %v242 = vmul.f32 1.0, %v241
  %v243 = vtanh.pop %v223
  %v244 = vmul.f32 %v242, %v172
  %246 = vrot.lane.b32.xlu0 %v243, 64
  %v247 = vpop.permute.xlu0 %246
  %v249 = vmul.f32 %v242, %v247
  %251 = vrot.lane.b32.xlu0 %v249, 32
  %v252 = vpop.permute.xlu0 %251
  %v254 = vadd.f32 %v244, %v252
  %v255 = vtanh.pop %v254
  %257 = vrot.lane.b32.xlu0 %v255, 64
  %v258 = vpop.permute.xlu0 %257
  %v260 = vmul.f32 %v242, %v258
  %262 = vrot.lane.b32.xlu0 %v260, 32
  %v263 = vpop.permute.xlu0 %262
  %s265 = scalar_lea.vmem %s2, 16
  %266 = vst.msk [vmem:[%s265] sm:$0xff] %vm39, %v263
  %s267 = scalar_lea.vmem %s0, 24
  %v268 = vld [vmem:[%s267] sm:$0xff]
  %v269 = vpack.c.bf16 %v260, %v260
  %v270 = vld [vmem:[%s1] sm:$0xf]
  %v271 = vld [vmem:[%s1 + $0x4] sm:$0xf]
  %v272 = vld [vmem:[%s1 + $0x8] sm:$0xf]
  %v273 = vld [vmem:[%s1 + $0xc] sm:$0xf]
  %275 = vrot.lane.b32.xlu0 %v269, 32
  %v276 = vpop.permute.xlu0 %275
  %v281 = vunpack.c.l.b16 %v270
  %v282 = vunpack.c.l.b16 %v271
  %v283 = vunpack.c.l.b16 %v272
  %v284 = vunpack.c.l.b16 %v273
  %v285 = vpack.c.b16 %v282, %v281
  %v286 = vpack.c.b16 %v284, %v283
  %v290 = vsel %vm39, %v276, 0
  %292 = vmatpush.bf16.msra.mxu0 0
  %293 = vmatpush.bf16.msra.mxu0 0
  %294 = vmatpush.bf16.msra.mxu0 0
  %295 = vmatpush.bf16.msra.mxu0 0
  %296 = vmatpush.bf16.msra.mxu0 0
  %297 = vmatpush.bf16.msra.mxu0 0
  %298 = vmatpush.bf16.msra.mxu0 %v286
  %299 = vmatpush.bf16.msra.mxu0 %v285
  %300 = vmatmul.bf16.gmra.mxu0 %v290
  %v301 = vpop.f32.mrf.mxu0
  %v302 = vadd.f32 0.0, %v301
  %v303 = vpop.f32.mrf.mxu0
  %304 = vdwg.mxu0
  %v305 = vadd.f32 %v268, %v302
  %v306 = vxor.u32 %v305, 2147483648
  %v307 = vmul.f32 %v306, 1.442695
  %v308 = vpow.pop %v307
  %v309 = vadd.f32 %v308, 1.0
  %v310 = vrcp.pop %v309
  %v311 = vmul.f32 %v309, %v310
  %v312 = vsub.f32 1.0, %v311
  %v313 = vmul.f32 %v310, %v312
  %v314 = vadd.f32 %v310, %v313
  %vm315 = vweird.f32 %v309
  %vm316 = vweird.f32 %v310
  %vm317 = vmor %vm315, %vm316
  %v318 = vsel %vm317, %v310, %v314
  %v319 = vand.u32 2147483647, %v309
  %vm320 = vcmp.eq.f32.partialorder %v319, 8.507059e+37
  %v321 = vand.u32 %v309, 2147483648
  %v322 = vor.u32 1.1754944e-38, %v321
  %v323 = vsel %vm320, %v322, %v318
  %v324 = vmul.f32 1.0, %v323
  %v325 = vtanh.pop %v305
  %v326 = vmul.f32 %v324, %v254
  %328 = vrot.lane.b32.xlu0 %v325, 64
  %v329 = vpop.permute.xlu0 %328
  %v331 = vmul.f32 %v324, %v329
  %333 = vrot.lane.b32.xlu0 %v331, 32
  %v334 = vpop.permute.xlu0 %333
  %v336 = vadd.f32 %v326, %v334
  %v337 = vtanh.pop %v336
  %339 = vrot.lane.b32.xlu0 %v337, 64
  %v340 = vpop.permute.xlu0 %339
  %v342 = vmul.f32 %v324, %v340
  %344 = vrot.lane.b32.xlu0 %v342, 32
  %v345 = vpop.permute.xlu0 %344
  %s347 = scalar_lea.vmem %s2, 24
  %348 = vst.msk [vmem:[%s347] sm:$0xff] %vm39, %v345
  %s349 = scalar_lea.vmem %s0, 32
  %v350 = vld [vmem:[%s349] sm:$0xff]
  %v351 = vpack.c.bf16 %v342, %v342
  %v352 = vld [vmem:[%s1] sm:$0xf]
  %v353 = vld [vmem:[%s1 + $0x4] sm:$0xf]
  %v354 = vld [vmem:[%s1 + $0x8] sm:$0xf]
  %v355 = vld [vmem:[%s1 + $0xc] sm:$0xf]
  %357 = vrot.lane.b32.xlu0 %v351, 32
  %v358 = vpop.permute.xlu0 %357
  %v363 = vunpack.c.l.b16 %v352
  %v364 = vunpack.c.l.b16 %v353
  %v365 = vunpack.c.l.b16 %v354
  %v366 = vunpack.c.l.b16 %v355
  %v367 = vpack.c.b16 %v364, %v363
  %v368 = vpack.c.b16 %v366, %v365
  %v372 = vsel %vm39, %v358, 0
  %374 = vmatpush.bf16.msra.mxu0 0
  %375 = vmatpush.bf16.msra.mxu0 0
  %376 = vmatpush.bf16.msra.mxu0 0
  %377 = vmatpush.bf16.msra.mxu0 0
  %378 = vmatpush.bf16.msra.mxu0 0
  %379 = vmatpush.bf16.msra.mxu0 0
  %380 = vmatpush.bf16.msra.mxu0 %v368
  %381 = vmatpush.bf16.msra.mxu0 %v367
  %382 = vmatmul.bf16.gmra.mxu0 %v372
  %v383 = vpop.f32.mrf.mxu0
  %v384 = vadd.f32 0.0, %v383
  %v385 = vpop.f32.mrf.mxu0
  %386 = vdwg.mxu0
  %v387 = vadd.f32 %v350, %v384
  %v388 = vxor.u32 %v387, 2147483648
  %v389 = vmul.f32 %v388, 1.442695
  %v390 = vpow.pop %v389
  %v391 = vadd.f32 %v390, 1.0
  %v392 = vrcp.pop %v391
  %v393 = vmul.f32 %v391, %v392
  %v394 = vsub.f32 1.0, %v393
  %v395 = vmul.f32 %v392, %v394
  %v396 = vadd.f32 %v392, %v395
  %vm397 = vweird.f32 %v391
  %vm398 = vweird.f32 %v392
  %vm399 = vmor %vm397, %vm398
  %v400 = vsel %vm399, %v392, %v396
  %v401 = vand.u32 2147483647, %v391
  %vm402 = vcmp.eq.f32.partialorder %v401, 8.507059e+37
  %v403 = vand.u32 %v391, 2147483648
  %v404 = vor.u32 1.1754944e-38, %v403
  %v405 = vsel %vm402, %v404, %v400
  %v406 = vmul.f32 1.0, %v405
  %v407 = vtanh.pop %v387
  %v408 = vmul.f32 %v406, %v336
  %410 = vrot.lane.b32.xlu0 %v407, 64
  %v411 = vpop.permute.xlu0 %410
  %v413 = vmul.f32 %v406, %v411
  %415 = vrot.lane.b32.xlu0 %v413, 32
  %v416 = vpop.permute.xlu0 %415
  %v418 = vadd.f32 %v408, %v416
  %v419 = vtanh.pop %v418
  %421 = vrot.lane.b32.xlu0 %v419, 64
  %v422 = vpop.permute.xlu0 %421
  %v424 = vmul.f32 %v406, %v422
  %426 = vrot.lane.b32.xlu0 %v424, 32
  %v427 = vpop.permute.xlu0 %426
  %s429 = scalar_lea.vmem %s2, 32
  %430 = vst.msk [vmem:[%s429] sm:$0xff] %vm39, %v427
  %s431 = scalar_lea.vmem %s0, 40
  %v432 = vld [vmem:[%s431] sm:$0xff]
  %v433 = vpack.c.bf16 %v424, %v424
  %v434 = vld [vmem:[%s1] sm:$0xf]
  %v435 = vld [vmem:[%s1 + $0x4] sm:$0xf]
  %v436 = vld [vmem:[%s1 + $0x8] sm:$0xf]
  %v437 = vld [vmem:[%s1 + $0xc] sm:$0xf]
  %439 = vrot.lane.b32.xlu0 %v433, 32
  %v440 = vpop.permute.xlu0 %439
  %v445 = vunpack.c.l.b16 %v434
  %v446 = vunpack.c.l.b16 %v435
  %v447 = vunpack.c.l.b16 %v436
  %v448 = vunpack.c.l.b16 %v437
  %v449 = vpack.c.b16 %v446, %v445
  %v450 = vpack.c.b16 %v448, %v447
  %v454 = vsel %vm39, %v440, 0
  %456 = vmatpush.bf16.msra.mxu0 0
  %457 = vmatpush.bf16.msra.mxu0 0
  %458 = vmatpush.bf16.msra.mxu0 0
  %459 = vmatpush.bf16.msra.mxu0 0
  %460 = vmatpush.bf16.msra.mxu0 0
  %461 = vmatpush.bf16.msra.mxu0 0
  %462 = vmatpush.bf16.msra.mxu0 %v450
  %463 = vmatpush.bf16.msra.mxu0 %v449
  %464 = vmatmul.bf16.gmra.mxu0 %v454
  %v465 = vpop.f32.mrf.mxu0
  %v466 = vadd.f32 0.0, %v465
  %v467 = vpop.f32.mrf.mxu0
  %468 = vdwg.mxu0
  %v469 = vadd.f32 %v432, %v466
  %v470 = vxor.u32 %v469, 2147483648
  %v471 = vmul.f32 %v470, 1.442695
  %v472 = vpow.pop %v471
  %v473 = vadd.f32 %v472, 1.0
  %v474 = vrcp.pop %v473
  %v475 = vmul.f32 %v473, %v474
  %v476 = vsub.f32 1.0, %v475
  %v477 = vmul.f32 %v474, %v476
  %v478 = vadd.f32 %v474, %v477
  %vm479 = vweird.f32 %v473
  %vm480 = vweird.f32 %v474
  %vm481 = vmor %vm479, %vm480
  %v482 = vsel %vm481, %v474, %v478
  %v483 = vand.u32 2147483647, %v473
  %vm484 = vcmp.eq.f32.partialorder %v483, 8.507059e+37
  %v485 = vand.u32 %v473, 2147483648
  %v486 = vor.u32 1.1754944e-38, %v485
  %v487 = vsel %vm484, %v486, %v482
  %v488 = vmul.f32 1.0, %v487
  %v489 = vtanh.pop %v469
  %v490 = vmul.f32 %v488, %v418
  %492 = vrot.lane.b32.xlu0 %v489, 64
  %v493 = vpop.permute.xlu0 %492
  %v495 = vmul.f32 %v488, %v493
  %497 = vrot.lane.b32.xlu0 %v495, 32
  %v498 = vpop.permute.xlu0 %497
  %v500 = vadd.f32 %v490, %v498
  %v501 = vtanh.pop %v500
  %503 = vrot.lane.b32.xlu0 %v501, 64
  %v504 = vpop.permute.xlu0 %503
  %v506 = vmul.f32 %v488, %v504
  %508 = vrot.lane.b32.xlu0 %v506, 32
  %v509 = vpop.permute.xlu0 %508
  %s511 = scalar_lea.vmem %s2, 40
  %512 = vst.msk [vmem:[%s511] sm:$0xff] %vm39, %v509
  %s513 = scalar_lea.vmem %s0, 48
  %v514 = vld [vmem:[%s513] sm:$0xff]
  %v515 = vpack.c.bf16 %v506, %v506
  %v516 = vld [vmem:[%s1] sm:$0xf]
  %v517 = vld [vmem:[%s1 + $0x4] sm:$0xf]
  %v518 = vld [vmem:[%s1 + $0x8] sm:$0xf]
  %v519 = vld [vmem:[%s1 + $0xc] sm:$0xf]
  %521 = vrot.lane.b32.xlu0 %v515, 32
  %v522 = vpop.permute.xlu0 %521
  %v527 = vunpack.c.l.b16 %v516
  %v528 = vunpack.c.l.b16 %v517
  %v529 = vunpack.c.l.b16 %v518
  %v530 = vunpack.c.l.b16 %v519
  %v531 = vpack.c.b16 %v528, %v527
  %v532 = vpack.c.b16 %v530, %v529
  %v536 = vsel %vm39, %v522, 0
  %538 = vmatpush.bf16.msra.mxu0 0
  %539 = vmatpush.bf16.msra.mxu0 0
  %540 = vmatpush.bf16.msra.mxu0 0
  %541 = vmatpush.bf16.msra.mxu0 0
  %542 = vmatpush.bf16.msra.mxu0 0
  %543 = vmatpush.bf16.msra.mxu0 0
  %544 = vmatpush.bf16.msra.mxu0 %v532
  %545 = vmatpush.bf16.msra.mxu0 %v531
  %546 = vmatmul.bf16.gmra.mxu0 %v536
  %v547 = vpop.f32.mrf.mxu0
  %v548 = vadd.f32 0.0, %v547
  %v549 = vpop.f32.mrf.mxu0
  %550 = vdwg.mxu0
  %v551 = vadd.f32 %v514, %v548
  %v552 = vxor.u32 %v551, 2147483648
  %v553 = vmul.f32 %v552, 1.442695
  %v554 = vpow.pop %v553
  %v555 = vadd.f32 %v554, 1.0
  %v556 = vrcp.pop %v555
  %v557 = vmul.f32 %v555, %v556
  %v558 = vsub.f32 1.0, %v557
  %v559 = vmul.f32 %v556, %v558
  %v560 = vadd.f32 %v556, %v559
  %vm561 = vweird.f32 %v555
  %vm562 = vweird.f32 %v556
  %vm563 = vmor %vm561, %vm562
  %v564 = vsel %vm563, %v556, %v560
  %v565 = vand.u32 2147483647, %v555
  %vm566 = vcmp.eq.f32.partialorder %v565, 8.507059e+37
  %v567 = vand.u32 %v555, 2147483648
  %v568 = vor.u32 1.1754944e-38, %v567
  %v569 = vsel %vm566, %v568, %v564
  %v570 = vmul.f32 1.0, %v569
  %v571 = vtanh.pop %v551
  %v572 = vmul.f32 %v570, %v500
  %574 = vrot.lane.b32.xlu0 %v571, 64
  %v575 = vpop.permute.xlu0 %574
  %v577 = vmul.f32 %v570, %v575
  %579 = vrot.lane.b32.xlu0 %v577, 32
  %v580 = vpop.permute.xlu0 %579
  %v582 = vadd.f32 %v572, %v580
  %v583 = vtanh.pop %v582
  %585 = vrot.lane.b32.xlu0 %v583, 64
  %v586 = vpop.permute.xlu0 %585
  %v588 = vmul.f32 %v570, %v586
  %590 = vrot.lane.b32.xlu0 %v588, 32
  %v591 = vpop.permute.xlu0 %590
  %s593 = scalar_lea.vmem %s2, 48
  %594 = vst.msk [vmem:[%s593] sm:$0xff] %vm39, %v591
  %s595 = scalar_lea.vmem %s0, 56
  %v596 = vld [vmem:[%s595] sm:$0xff]
  %v597 = vpack.c.bf16 %v588, %v588
  %v598 = vld [vmem:[%s1] sm:$0xf]
  %v599 = vld [vmem:[%s1 + $0x4] sm:$0xf]
  %v600 = vld [vmem:[%s1 + $0x8] sm:$0xf]
  %v601 = vld [vmem:[%s1 + $0xc] sm:$0xf]
  %603 = vrot.lane.b32.xlu0 %v597, 32
  %v604 = vpop.permute.xlu0 %603
  %v609 = vunpack.c.l.b16 %v598
  %v610 = vunpack.c.l.b16 %v599
  %v611 = vunpack.c.l.b16 %v600
  %v612 = vunpack.c.l.b16 %v601
  %v613 = vpack.c.b16 %v610, %v609
  %v614 = vpack.c.b16 %v612, %v611
  %v618 = vsel %vm39, %v604, 0
  %620 = vmatpush.bf16.msra.mxu0 0
  %621 = vmatpush.bf16.msra.mxu0 0
  %622 = vmatpush.bf16.msra.mxu0 0
  %623 = vmatpush.bf16.msra.mxu0 0
  %624 = vmatpush.bf16.msra.mxu0 0
  %625 = vmatpush.bf16.msra.mxu0 0
  %626 = vmatpush.bf16.msra.mxu0 %v614
  %627 = vmatpush.bf16.msra.mxu0 %v613
  %628 = vmatmul.bf16.gmra.mxu0 %v618
  %v629 = vpop.f32.mrf.mxu0
  %v630 = vadd.f32 0.0, %v629
  %v631 = vpop.f32.mrf.mxu0
  %632 = vdwg.mxu0
  %v633 = vadd.f32 %v596, %v630
  %v634 = vxor.u32 %v633, 2147483648
  %v635 = vmul.f32 %v634, 1.442695
  %v636 = vpow.pop %v635
  %v637 = vadd.f32 %v636, 1.0
  %v638 = vrcp.pop %v637
  %v639 = vmul.f32 %v637, %v638
  %v640 = vsub.f32 1.0, %v639
  %v641 = vmul.f32 %v638, %v640
  %v642 = vadd.f32 %v638, %v641
  %vm643 = vweird.f32 %v637
  %vm644 = vweird.f32 %v638
  %vm645 = vmor %vm643, %vm644
  %v646 = vsel %vm645, %v638, %v642
  %v647 = vand.u32 2147483647, %v637
  %vm648 = vcmp.eq.f32.partialorder %v647, 8.507059e+37
  %v649 = vand.u32 %v637, 2147483648
  %v650 = vor.u32 1.1754944e-38, %v649
  %v651 = vsel %vm648, %v650, %v646
  %v652 = vmul.f32 1.0, %v651
  %v653 = vtanh.pop %v633
  %v654 = vmul.f32 %v652, %v582
  %656 = vrot.lane.b32.xlu0 %v653, 64
  %v657 = vpop.permute.xlu0 %656
  %v659 = vmul.f32 %v652, %v657
  %661 = vrot.lane.b32.xlu0 %v659, 32
  %v662 = vpop.permute.xlu0 %661
  %v664 = vadd.f32 %v654, %v662
  %v665 = vtanh.pop %v664
  %667 = vrot.lane.b32.xlu0 %v665, 64
  %v668 = vpop.permute.xlu0 %667
  %v670 = vmul.f32 %v652, %v668
  %672 = vrot.lane.b32.xlu0 %v670, 32
  %v673 = vpop.permute.xlu0 %672
  %s675 = scalar_lea.vmem %s2, 56
  %676 = vst.msk [vmem:[%s675] sm:$0xff] %vm39, %v673
  %677 = vst.msk [vmem:[#allocation2] sm:$0xff] %vm39, %v673
  %679 = vrot.lane.b32.xlu0 %v664, 96
  %v680 = vpop.permute.xlu0 %679
  %682 = vst.msk [vmem:[#allocation3] sm:$0xff] %vm39, %v680
  // Predicated region
  $region14: #{apc_lstm_forward.6} parent=0 // pred_check
    _
  $region15: #{apc_lstm_forward.6} parent=0 // pred_check_branch
    %684 = sbr.rel (0) target = $region17
  $region16: #{apc_lstm_forward.6} parent=0 // pred_region
    _
  $region17: #{apc_lstm_forward.6} parent=0 // pred_fallthru
    _
  // Predicated region
  $region18: #{apc_lstm_forward.6} parent=0 // pred_check
    _
  $region19: #{apc_lstm_forward.6} parent=0 // pred_check_branch
    %686 = sbr.rel (0) target = $region21
  $region20: #{apc_lstm_forward.6} parent=0 // pred_region
    _
  $region21: #{apc_lstm_forward.6} parent=0 // pred_fallthru
    _

</llo_original>
